<compile_context>
chip_gen: v7x
topology: tpu7x:2x2x1
jax: 0.10.0
libtpu: 0.0.40
codegen_flags: <defaults>
</compile_context>

<pallas_src>
import functools
import math

import jax
import jax.numpy as jnp
from jax.experimental import pallas as pl
from jax.experimental.pallas import tpu as pltpu

LN_EPS = 1e-5  # PyTorch nn.LayerNorm default


# ---------------------------------------------------------------------------
# Fused forward kernel: grid = (batch_blocks, n_layer)
# ---------------------------------------------------------------------------
def _fused_forward_kernel(x_ref, pe_ref,
                          wqkv_ref,
                          g1_ref, be1_ref,
                          w1_ref, bb1_ref, w2_ref, bb2_ref,
                          g2_ref, be2_ref,
                          o_ref, *, e_true):
    """One decoder layer for one batch block; H is resident in o_ref.

    x_ref    : (bb, N, Ep)   padded input embeddings block (f32)
    pe_ref   : (N, Ep)       padded positional embeddings (f32)
    wqkv_ref : (1, Ep, 3Ep)  fused q|k|v projection, (in, out), bf16,
                             1/sqrt(E) pre-folded into the q columns
    w1/w2    : (1, Ep, Ep)   MLP weights, (in, out), bf16
    g*/be*/bb*: (1, 1, Ep)   layernorm gains/biases and MLP biases (f32,
                             padded lanes are zero)
    o_ref    : (bb, N, Ep)   hidden state (resident across the layer axis)
    """
    layer = pl.program_id(1)
    bb, N, Ep = x_ref.shape
    inv_e = 1.0 / e_true  # true (unpadded) embedding width

    # Layer 0: initialize the resident hidden state (input + pos-embedding).
    @pl.when(layer == 0)
    def _():
        o_ref[...] = x_ref[...] + pe_ref[...][None]

    H3 = o_ref[...]                               # (bb, N, Ep), f32
    H2 = H3.reshape(bb * N, Ep)

    # --- single-head causal self-attention (module never splits heads) ---
    # Fused, pre-scaled QKV projection: one bf16 MXU push, f32 accumulate.
    qkv = jnp.dot(H2.astype(jnp.bfloat16), wqkv_ref[0],
                  preferred_element_type=jnp.float32)
    qkv = qkv.reshape(bb, N, 3 * Ep)
    q = qkv[:, :, 0 * Ep:1 * Ep]                  # 128-lane aligned slices
    k = qkv[:, :, 1 * Ep:2 * Ep]
    v = qkv[:, :, 2 * Ep:3 * Ep]

    scores = jnp.einsum('bqe,bke->bqk',
                        q.astype(jnp.bfloat16), k.astype(jnp.bfloat16),
                        preferred_element_type=jnp.float32)

    # In-kernel causal mask (row >= col).  The PyTorch +1.0 on allowed
    # positions is softmax-invariant; a large finite negative replaces -inf.
    row = jax.lax.broadcasted_iota(jnp.int32, (N, N), 0)
    col = jax.lax.broadcasted_iota(jnp.int32, (N, N), 1)
    scores = jnp.where((row >= col)[None], scores, jnp.float32(-1e30))

    scores = scores - jnp.max(scores, axis=-1, keepdims=True)
    p = jnp.exp(scores)
    attn = p * pl.reciprocal(jnp.sum(p, axis=-1, keepdims=True), approx=True)
    attn_out = jnp.einsum('bqk,bke->bqe',
                          attn.astype(jnp.bfloat16), v.astype(jnp.bfloat16),
                          preferred_element_type=jnp.float32)

    H3 = H3 + attn_out

    # --- LayerNorm 1 (one-pass sum / sum-sq; divide by true E) ---
    H2 = H3.reshape(bb * N, Ep)
    mu = jnp.sum(H2, axis=-1, keepdims=True) * inv_e
    ex2 = jnp.sum(H2 * H2, axis=-1, keepdims=True) * inv_e
    var = ex2 - mu * mu
    H2 = (H2 - mu) * jax.lax.rsqrt(var + LN_EPS) * g1_ref[0] + be1_ref[0]

    # --- MLP (Linear -> ReLU -> Linear) + residual, bf16 MXU ---
    h1 = jnp.dot(H2.astype(jnp.bfloat16), w1_ref[0],
                 preferred_element_type=jnp.float32) + bb1_ref[0]
    h1 = jnp.maximum(h1, 0.0)
    h2 = jnp.dot(h1.astype(jnp.bfloat16), w2_ref[0],
                 preferred_element_type=jnp.float32) + bb2_ref[0]
    H2 = H2 + h2

    # --- LayerNorm 2 ---
    mu = jnp.sum(H2, axis=-1, keepdims=True) * inv_e
    ex2 = jnp.sum(H2 * H2, axis=-1, keepdims=True) * inv_e
    var = ex2 - mu * mu
    H2 = (H2 - mu) * jax.lax.rsqrt(var + LN_EPS) * g2_ref[0] + be2_ref[0]

    o_ref[...] = H2.reshape(bb, N, Ep)


# ---------------------------------------------------------------------------
# Host-side parameter prep: pad to 128 lanes, fold attn scale, cast to bf16
# ---------------------------------------------------------------------------
def prepare_kernel_params(params, n_embd):
    E = n_embd
    Ep = max(128, ((E + 127) // 128) * 128)
    scale = 1.0 / math.sqrt(E)

    def pad_mat(w):                         # (L, E, E) -> (L, Ep, Ep), zeros
        L = w.shape[0]
        return jnp.zeros((L, Ep, Ep), w.dtype).at[:, :w.shape[1], :w.shape[2]].set(w)

    def pad_vec(v):                         # (L, 1, E) -> (L, 1, Ep), zeros
        L = v.shape[0]
        return jnp.zeros((L, 1, Ep), v.dtype).at[:, :, :v.shape[2]].set(v)

    wqkv = params["wqkv"]                   # (L, E, 3E) f32, unscaled
    wq = pad_mat(wqkv[:, :, :E] * scale)    # fold 1/sqrt(E) into q columns
    wk = pad_mat(wqkv[:, :, E:2 * E])
    wv = pad_mat(wqkv[:, :, 2 * E:])

    kp = {
        "wqkv": jnp.concatenate([wq, wk, wv], axis=-1).astype(jnp.bfloat16),
        "mlp_w1": pad_mat(params["mlp_w1"]).astype(jnp.bfloat16),
        "mlp_w2": pad_mat(params["mlp_w2"]).astype(jnp.bfloat16),
        "mlp_b1": pad_vec(params["mlp_b1"]),
        "mlp_b2": pad_vec(params["mlp_b2"]),
        "ln1_g": pad_vec(params["ln1_g"]), "ln1_b": pad_vec(params["ln1_b"]),
        "ln2_g": pad_vec(params["ln2_g"]), "ln2_b": pad_vec(params["ln2_b"]),
        "wpe": jnp.zeros((params["wpe"].shape[0], Ep), jnp.float32)
                  .at[:, :E].set(params["wpe"]),
    }
    return kp, Ep


# ---------------------------------------------------------------------------
# Wrapper: single pallas_call for the entire forward pass
# ---------------------------------------------------------------------------
def decoder_transformer_forward(inputs_embeds, params, positional_embedding=True):
    B, N, E = inputs_embeds.shape
    kp, Ep = prepare_kernel_params(params, E)
    L = kp["wqkv"].shape[0]

    x = jnp.zeros((B, N, Ep), jnp.float32).at[:, :, :E].set(
        inputs_embeds.astype(jnp.float32))
    pe = kp["wpe"][:N]                       # position_ids = arange(N)
    if not positional_embedding:
        pe = jnp.zeros_like(pe)

    # Split the batch axis only when each block still carries enough matmul
    # rows to fill the MXU (>=256); otherwise a second block is pure grid
    # overhead on single-TC v5e/v6e and halves MXU fill everywhere.
    TARGET_ROWS = 256
    b_blocks = 2 if (B % 2 == 0 and (B // 2) * N >= TARGET_ROWS) else 1
    bb = B // b_blocks

    kernel = functools.partial(_fused_forward_kernel, e_true=float(E))

    act_spec = pl.BlockSpec((bb, N, Ep), lambda b, l: (b, 0, 0))
    pe_spec = pl.BlockSpec((N, Ep), lambda b, l: (0, 0))
    wqkv_spec = pl.BlockSpec((1, Ep, 3 * Ep), lambda b, l: (l, 0, 0))
    mat_spec = pl.BlockSpec((1, Ep, Ep), lambda b, l: (l, 0, 0))
    vec_spec = pl.BlockSpec((1, 1, Ep), lambda b, l: (l, 0, 0))

    # TODO(synk): if E scales toward ~1k+ on v7x (64 MiB VMEM), K-tile the
    # (Ep,3Ep)/(Ep,Ep) weight BlockSpecs along the contraction dim and set
    # CompilerParams(vmem_limit_bytes=...) explicitly; bf16 weights already
    # halve the double-buffered weight footprint.
    out = pl.pallas_call(
        kernel,
        out_shape=jax.ShapeDtypeStruct((B, N, Ep), jnp.float32),
        grid=(b_blocks, L),
        in_specs=[act_spec, pe_spec,
                  wqkv_spec,
                  vec_spec, vec_spec,                       # ln1 gamma, beta
                  mat_spec, vec_spec, mat_spec, vec_spec,   # mlp w1,b1,w2,b2
                  vec_spec, vec_spec],                      # ln2 gamma, beta
        out_specs=act_spec,                                 # resident across layer axis
        compiler_params=pltpu.CompilerParams(
            dimension_semantics=("parallel", "arbitrary")),
    )(x, pe, kp["wqkv"],
      kp["ln1_g"], kp["ln1_b"],
      kp["mlp_w1"], kp["mlp_b1"], kp["mlp_w2"], kp["mlp_b2"],
      kp["ln2_g"], kp["ln2_b"])

    return out[:, :, :E]


# ---------------------------------------------------------------------------
# Deterministic parameter construction (synthetic; mirrors __init__ shapes,
# stacked along a leading n_layer axis, linear weights stored as (in, out))
# ---------------------------------------------------------------------------
def make_params(key, n_positions, n_embd, n_layer, initializer_range=0.02):
    E = n_embd
    keys = jax.random.split(key, 1 + 7 * n_layer)
    params = {"wpe": initializer_range *
              jax.random.normal(keys[0], (n_positions, E), jnp.float32)}

    wqkv, w1, b1, w2, b2 = [], [], [], [], []
    g1, be1, g2, be2 = [], [], [], []
    kidx = 1
    for _ in range(n_layer):
        def nrm(shape):
            nonlocal kidx
            out = 0.02 * jax.random.normal(keys[kidx], shape, jnp.float32)
            kidx += 1
            return out
        wq = nrm((E, E))
        wk = nrm((E, E))
        wv = nrm((E, E))
        wqkv.append(jnp.concatenate([wq, wk, wv], axis=1))   # (E, 3E), unscaled
        w1.append(nrm((E, E)))
        b1.append(nrm((1, E)))
        w2.append(nrm((E, E)))
        b2.append(nrm((1, E)))
        g1.append(jnp.ones((1, E), jnp.float32))
        be1.append(jnp.zeros((1, E), jnp.float32))
        g2.append(jnp.ones((1, E), jnp.float32))
        be2.append(jnp.zeros((1, E), jnp.float32))

    params.update(
        wqkv=jnp.stack(wqkv),                         # (L, E, 3E)
        mlp_w1=jnp.stack(w1), mlp_b1=jnp.stack(b1),   # (L, E, E), (L, 1, E)
        mlp_w2=jnp.stack(w2), mlp_b2=jnp.stack(b2),
        ln1_g=jnp.stack(g1), ln1_b=jnp.stack(be1),    # (L, 1, E)
        ln2_g=jnp.stack(g2), ln2_b=jnp.stack(be2),
    )
    return params


# ---------------------------------------------------------------------------
# Pure-JAX reference (for correctness check only; f32 throughout)
# ---------------------------------------------------------------------------
def reference_forward(x, params, positional_embedding=True):
    B, N, E = x.shape
    H = x
    if positional_embedding:
        H = H + params["wpe"][:N][None]
    L = params["wqkv"].shape[0]
    tri = jnp.tril(jnp.ones((N, N), jnp.float32))
    add_mask = jnp.where(tri > 0, 1.0, -jnp.inf)     # matches PyTorch exactly
    for l in range(L):
        Wqkv = params["wqkv"][l]
        q = H @ Wqkv[:, :E]
        k = H @ Wqkv[:, E:2 * E]
        v = H @ Wqkv[:, 2 * E:]
        s = (q @ jnp.swapaxes(k, -1, -2)) / math.sqrt(E) + add_mask[None]
        w = jax.nn.softmax(s, axis=-1)
        H = H + w @ v
        mu = H.mean(-1, keepdims=True)
        var = ((H - mu) ** 2).mean(-1, keepdims=True)
        H = (H - mu) / jnp.sqrt(var + LN_EPS) * params["ln1_g"][l, 0] + params["ln1_b"][l, 0]
        m = jnp.maximum(H @ params["mlp_w1"][l] + params["mlp_b1"][l, 0], 0.0)
        m = m @ params["mlp_w2"][l] + params["mlp_b2"][l, 0]
        H = H + m
        mu = H.mean(-1, keepdims=True)
        var = ((H - mu) ** 2).mean(-1, keepdims=True)
        H = (H - mu) / jnp.sqrt(var + LN_EPS) * params["ln2_g"][l, 0] + params["ln2_b"][l, 0]
    return H


if __name__ == "__main__":
    # config: n_positions=16, n_embd=32, n_head=2 (unused in forward), n_layer=2
    n_positions, n_embd, n_layer = 16, 32, 2
    B, N = 2, 8

    key = jax.random.PRNGKey(0)
    k_in, k_par = jax.random.split(key)
    inputs_embeds = jax.random.normal(k_in, (B, N, n_embd), jnp.float32)
    params = make_params(k_par, n_positions, n_embd, n_layer)

    out = decoder_transformer_forward(inputs_embeds, params)
    out = jax.block_until_ready(out)

    ref = reference_forward(inputs_embeds, params)
    assert out.shape == (B, N, n_embd)
    # Tolerance covers bf16 MXU operands + EUP approximate softmax reciprocal.
    assert jnp.allclose(out, ref, atol=2e-2, rtol=2e-2), "mismatch vs reference"
    print("KERNEL_OK")
</pallas_src>

<mosaic_0001>
module attributes {stable_mosaic.version = 11 : i64} {
  func.func @_fused_forward_kernel(%arg0: i32, %arg1: i32, %arg2: memref<2x8x128xf32, #tpu.memory_space<vmem>>, %arg3: memref<8x128xf32, #tpu.memory_space<vmem>>, %arg4: memref<1x128x384xbf16, #tpu.memory_space<vmem>>, %arg5: memref<1x1x128xf32, #tpu.memory_space<vmem>>, %arg6: memref<1x1x128xf32, #tpu.memory_space<vmem>>, %arg7: memref<1x128x128xbf16, #tpu.memory_space<vmem>>, %arg8: memref<1x1x128xf32, #tpu.memory_space<vmem>>, %arg9: memref<1x128x128xbf16, #tpu.memory_space<vmem>>, %arg10: memref<1x1x128xf32, #tpu.memory_space<vmem>>, %arg11: memref<1x1x128xf32, #tpu.memory_space<vmem>>, %arg12: memref<1x1x128xf32, #tpu.memory_space<vmem>>, %arg13: memref<2x8x128xf32, #tpu.memory_space<vmem>>) attributes {dimension_semantics = [#tpu.dimension_semantics<parallel>, #tpu.dimension_semantics<arbitrary>], iteration_bounds = array<i64: 1, 2>, scalar_prefetch = 0 : i64, scratch_operands = 0 : i64, tpu.core_type = #tpu.core_type<tc>, window_params = [{transform_indices = @transform_0, window_bounds = array<i64: 2, 8, 128>}, {pipeline_mode = #tpu.pipeline_mode<synchronous>, transform_indices = @transform_1, window_bounds = array<i64: 8, 128>}, {transform_indices = @transform_2, window_bounds = array<i64: 1, 128, 384>}, {transform_indices = @transform_3, window_bounds = array<i64: 1, 1, 128>}, {transform_indices = @transform_4, window_bounds = array<i64: 1, 1, 128>}, {transform_indices = @transform_5, window_bounds = array<i64: 1, 128, 128>}, {transform_indices = @transform_6, window_bounds = array<i64: 1, 1, 128>}, {transform_indices = @transform_7, window_bounds = array<i64: 1, 128, 128>}, {transform_indices = @transform_8, window_bounds = array<i64: 1, 1, 128>}, {transform_indices = @transform_9, window_bounds = array<i64: 1, 1, 128>}, {transform_indices = @transform_10, window_bounds = array<i64: 1, 1, 128>}, {transform_indices = @transform_11, window_bounds = array<i64: 2, 8, 128>}]} {
    %c0_i32 = arith.constant 0 : i32
    %0 = arith.cmpi eq, %arg1, %c0_i32 : i32
    %1 = arith.extui %0 : i1 to i32
    %c0_i32_0 = arith.constant 0 : i32
    %2 = arith.cmpi ne, %1, %c0_i32_0 : i32
    scf.if %2 {
      %c0_51 = arith.constant 0 : index
      %c0_52 = arith.constant 0 : index
      %c0_53 = arith.constant 0 : index
      %112 = vector.load %arg2[%c0_51, %c0_52, %c0_53] : memref<2x8x128xf32, #tpu.memory_space<vmem>>, vector<2x8x128xf32>
      %c0_54 = arith.constant 0 : index
      %c0_55 = arith.constant 0 : index
      %113 = vector.load %arg3[%c0_54, %c0_55] : memref<8x128xf32, #tpu.memory_space<vmem>>, vector<8x128xf32>
      %114 = vector.shape_cast %113 : vector<8x128xf32> to vector<1x8x128xf32>
      %115 = vector.broadcast %114 : vector<1x8x128xf32> to vector<2x8x128xf32>
      %116 = arith.addf %112, %115 : vector<2x8x128xf32>
      %c0_56 = arith.constant 0 : index
      %c0_57 = arith.constant 0 : index
      %c0_58 = arith.constant 0 : index
      %117 = vector.load %arg13[%c0_56, %c0_57, %c0_58] : memref<2x8x128xf32, #tpu.memory_space<vmem>>, vector<2x8x128xf32>
      tpu.vector_store %arg13[%c0_56, %c0_57, %c0_58], %116 {strides = array<i32>} : memref<2x8x128xf32, #tpu.memory_space<vmem>>, vector<2x8x128xf32>,
    } else {
    }
    %c0 = arith.constant 0 : index
    %c0_1 = arith.constant 0 : index
    %c0_2 = arith.constant 0 : index
    %3 = vector.load %arg13[%c0, %c0_1, %c0_2] : memref<2x8x128xf32, #tpu.memory_space<vmem>>, vector<2x8x128xf32>
    %4 = vector.shape_cast %3 : vector<2x8x128xf32> to vector<16x128xf32>
    %5 = arith.truncf %4 : vector<16x128xf32> to vector<16x128xbf16>
    %c0_3 = arith.constant 0 : index
    %c0_4 = arith.constant 0 : index
    %c0_5 = arith.constant 0 : index
    %6 = vector.load %arg4[%c0_3, %c0_4, %c0_5] : memref<1x128x384xbf16, #tpu.memory_space<vmem>>, vector<1x128x384xbf16>
    %7 = vector.shape_cast %6 : vector<1x128x384xbf16> to vector<128x384xbf16>
    %cst = arith.constant dense<0.000000e+00> : vector<16x384xf32>
    %8 = tpu.matmul %5, %7, %cst {dimension_numbers = #tpu.dot_dimension_numbers<[1], [0], [0], [1], [0, 0, 1, 1], [], []>} : vector<16x128xbf16>, vector<128x384xbf16>, vector<16x384xf32> -> vector<16x384xf32>
    %9 = vector.shape_cast %8 : vector<16x384xf32> to vector<2x8x384xf32>
    %10 = vector.extract_strided_slice %9 {offsets = [0, 0, 0], sizes = [2, 8, 128], strides = [1, 1, 1]} : vector<2x8x384xf32> to vector<2x8x128xf32>
    %11 = vector.extract_strided_slice %9 {offsets = [0, 0, 128], sizes = [2, 8, 128], strides = [1, 1, 1]} : vector<2x8x384xf32> to vector<2x8x128xf32>
    %12 = vector.extract_strided_slice %9 {offsets = [0, 0, 256], sizes = [2, 8, 128], strides = [1, 1, 1]} : vector<2x8x384xf32> to vector<2x8x128xf32>
    %13 = arith.truncf %10 : vector<2x8x128xf32> to vector<2x8x128xbf16>
    %14 = arith.truncf %11 : vector<2x8x128xf32> to vector<2x8x128xbf16>
    "tpu.trace_start"() <{level = 10 : i32, message = "bqe,bke->bqk"}> : () -> ()
    %cst_6 = arith.constant dense<0.000000e+00> : vector<2x8x8xf32>
    %15 = tpu.matmul %13, %14, %cst_6 {dimension_numbers = #tpu.dot_dimension_numbers<[2], [2], [1], [1], [0, 0, 0, 1, 1, 1], [0], [0]>} : vector<2x8x128xbf16>, vector<2x8x128xbf16>, vector<2x8x8xf32> -> vector<2x8x8xf32>
    "tpu.trace_stop"() : () -> ()
    %16 = tpu.iota {dimensions = array<i32: 0>} : vector<8x8xi32>
    %17 = tpu.iota {dimensions = array<i32: 1>} : vector<8x8xi32>
    %18 = arith.cmpi sge, %16, %17 : vector<8x8xi32>
    %19 = vector.shape_cast %18 : vector<8x8xi1> to vector<1x8x8xi1>
    %cst_7 = arith.constant -1.000000e+30 : f32
    %20 = vector.shape_cast %19 : vector<1x8x8xi1> to vector<1x8x8xi1>
    %21 = vector.broadcast %20 : vector<1x8x8xi1> to vector<2x8x8xi1>
    %22 = vector.broadcast %cst_7 : f32 to vector<2x8x8xf32>
    %23 = arith.select %21, %15, %22 : vector<2x8x8xi1>, vector<2x8x8xf32>
    %cst_8 = arith.constant dense<0xFF800000> : vector<2x8xf32>
    %24 = vector.multi_reduction <maximumf>, %23, %cst_8 [2] : vector<2x8x8xf32> to vector<2x8xf32>
    %25 = vector.shape_cast %24 : vector<2x8xf32> to vector<2x8x1xf32>
    %26 = vector.broadcast %25 : vector<2x8x1xf32> to vector<2x8x8xf32>
    %27 = arith.subf %23, %26 : vector<2x8x8xf32>
    %28 = math.exp %27 : vector<2x8x8xf32>
    %cst_9 = arith.constant dense<0.000000e+00> : vector<2x8xf32>
    %29 = vector.multi_reduction <add>, %28, %cst_9 [2] : vector<2x8x8xf32> to vector<2x8xf32>
    %30 = vector.shape_cast %29 : vector<2x8xf32> to vector<2x8x1xf32>
    %31 = tpu.reciprocal %30 {approx = true} : vector<2x8x1xf32> -> vector<2x8x1xf32>
    %32 = vector.broadcast %31 : vector<2x8x1xf32> to vector<2x8x8xf32>
    %33 = arith.mulf %28, %32 : vector<2x8x8xf32>
    %34 = arith.truncf %33 : vector<2x8x8xf32> to vector<2x8x8xbf16>
    %35 = arith.truncf %12 : vector<2x8x128xf32> to vector<2x8x128xbf16>
    "tpu.trace_start"() <{level = 10 : i32, message = "bqk,bke->bqe"}> : () -> ()
    %cst_10 = arith.constant dense<0.000000e+00> : vector<2x8x128xf32>
    %36 = tpu.matmul %34, %35, %cst_10 {dimension_numbers = #tpu.dot_dimension_numbers<[2], [1], [1], [2], [0, 0, 0, 1, 1, 2], [0], [0]>} : vector<2x8x8xbf16>, vector<2x8x128xbf16>, vector<2x8x128xf32> -> vector<2x8x128xf32>
    "tpu.trace_stop"() : () -> ()
    %37 = arith.addf %3, %36 : vector<2x8x128xf32>
    %38 = vector.shape_cast %37 : vector<2x8x128xf32> to vector<16x128xf32>
    %cst_11 = arith.constant dense<0.000000e+00> : vector<16xf32>
    %39 = vector.multi_reduction <add>, %38, %cst_11 [1] : vector<16x128xf32> to vector<16xf32>
    %40 = vector.shape_cast %39 : vector<16xf32> to vector<16x1xf32>
    %cst_12 = arith.constant 3.125000e-02 : f32
    %41 = vector.broadcast %cst_12 : f32 to vector<16x1xf32>
    %42 = arith.mulf %40, %41 : vector<16x1xf32>
    %43 = arith.mulf %38, %38 : vector<16x128xf32>
    %cst_13 = arith.constant dense<0.000000e+00> : vector<16xf32>
    %44 = vector.multi_reduction <add>, %43, %cst_13 [1] : vector<16x128xf32> to vector<16xf32>
    %45 = vector.shape_cast %44 : vector<16xf32> to vector<16x1xf32>
    %cst_14 = arith.constant 3.125000e-02 : f32
    %46 = vector.broadcast %cst_14 : f32 to vector<16x1xf32>
    %47 = arith.mulf %45, %46 : vector<16x1xf32>
    %48 = arith.mulf %42, %42 : vector<16x1xf32>
    %49 = arith.subf %47, %48 : vector<16x1xf32>
    %50 = vector.broadcast %42 : vector<16x1xf32> to vector<16x128xf32>
    %51 = arith.subf %38, %50 : vector<16x128xf32>
    %cst_15 = arith.constant 9.99999974E-6 : f32
    %52 = vector.broadcast %cst_15 : f32 to vector<16x1xf32>
    %53 = arith.addf %49, %52 : vector<16x1xf32>
    %54 = math.rsqrt %53 : vector<16x1xf32>
    %55 = vector.broadcast %54 : vector<16x1xf32> to vector<16x128xf32>
    %56 = arith.mulf %51, %55 : vector<16x128xf32>
    %c0_16 = arith.constant 0 : index
    %c0_17 = arith.constant 0 : index
    %c0_18 = arith.constant 0 : index
    %57 = vector.load %arg5[%c0_16, %c0_17, %c0_18] : memref<1x1x128xf32, #tpu.memory_space<vmem>>, vector<1x1x128xf32>
    %58 = vector.shape_cast %57 : vector<1x1x128xf32> to vector<1x128xf32>
    %59 = vector.broadcast %58 : vector<1x128xf32> to vector<16x128xf32>
    %60 = arith.mulf %56, %59 : vector<16x128xf32>
    %c0_19 = arith.constant 0 : index
    %c0_20 = arith.constant 0 : index
    %c0_21 = arith.constant 0 : index
    %61 = vector.load %arg6[%c0_19, %c0_20, %c0_21] : memref<1x1x128xf32, #tpu.memory_space<vmem>>, vector<1x1x128xf32>
    %62 = vector.shape_cast %61 : vector<1x1x128xf32> to vector<1x128xf32>
    %63 = vector.broadcast %62 : vector<1x128xf32> to vector<16x128xf32>
    %64 = arith.addf %60, %63 : vector<16x128xf32>
    %65 = arith.truncf %64 : vector<16x128xf32> to vector<16x128xbf16>
    %c0_22 = arith.constant 0 : index
    %c0_23 = arith.constant 0 : index
    %c0_24 = arith.constant 0 : index
    %66 = vector.load %arg7[%c0_22, %c0_23, %c0_24] : memref<1x128x128xbf16, #tpu.memory_space<vmem>>, vector<1x128x128xbf16>
    %67 = vector.shape_cast %66 : vector<1x128x128xbf16> to vector<128x128xbf16>
    %cst_25 = arith.constant dense<0.000000e+00> : vector<16x128xf32>
    %68 = tpu.matmul %65, %67, %cst_25 {dimension_numbers = #tpu.dot_dimension_numbers<[1], [0], [0], [1], [0, 0, 1, 1], [], []>} : vector<16x128xbf16>, vector<128x128xbf16>, vector<16x128xf32> -> vector<16x128xf32>
    %c0_26 = arith.constant 0 : index
    %c0_27 = arith.constant 0 : index
    %c0_28 = arith.constant 0 : index
    %69 = vector.load %arg8[%c0_26, %c0_27, %c0_28] : memref<1x1x128xf32, #tpu.memory_space<vmem>>, vector<1x1x128xf32>
    %70 = vector.shape_cast %69 : vector<1x1x128xf32> to vector<1x128xf32>
    %71 = vector.broadcast %70 : vector<1x128xf32> to vector<16x128xf32>
    %72 = arith.addf %68, %71 : vector<16x128xf32>
    %cst_29 = arith.constant 0.000000e+00 : f32
    %73 = vector.broadcast %cst_29 : f32 to vector<16x128xf32>
    %74 = arith.maximumf %72, %73 : vector<16x128xf32>
    %75 = arith.truncf %74 : vector<16x128xf32> to vector<16x128xbf16>
    %c0_30 = arith.constant 0 : index
    %c0_31 = arith.constant 0 : index
    %c0_32 = arith.constant 0 : index
    %76 = vector.load %arg9[%c0_30, %c0_31, %c0_32] : memref<1x128x128xbf16, #tpu.memory_space<vmem>>, vector<1x128x128xbf16>
    %77 = vector.shape_cast %76 : vector<1x128x128xbf16> to vector<128x128xbf16>
    %cst_33 = arith.constant dense<0.000000e+00> : vector<16x128xf32>
    %78 = tpu.matmul %75, %77, %cst_33 {dimension_numbers = #tpu.dot_dimension_numbers<[1], [0], [0], [1], [0, 0, 1, 1], [], []>} : vector<16x128xbf16>, vector<128x128xbf16>, vector<16x128xf32> -> vector<16x128xf32>
    %c0_34 = arith.constant 0 : index
    %c0_35 = arith.constant 0 : index
    %c0_36 = arith.constant 0 : index
    %79 = vector.load %arg10[%c0_34, %c0_35, %c0_36] : memref<1x1x128xf32, #tpu.memory_space<vmem>>, vector<1x1x128xf32>
    %80 = vector.shape_cast %79 : vector<1x1x128xf32> to vector<1x128xf32>
    %81 = vector.broadcast %80 : vector<1x128xf32> to vector<16x128xf32>
    %82 = arith.addf %78, %81 : vector<16x128xf32>
    %83 = arith.addf %64, %82 : vector<16x128xf32>
    %cst_37 = arith.constant dense<0.000000e+00> : vector<16xf32>
    %84 = vector.multi_reduction <add>, %83, %cst_37 [1] : vector<16x128xf32> to vector<16xf32>
    %85 = vector.shape_cast %84 : vector<16xf32> to vector<16x1xf32>
    %cst_38 = arith.constant 3.125000e-02 : f32
    %86 = vector.broadcast %cst_38 : f32 to vector<16x1xf32>
    %87 = arith.mulf %85, %86 : vector<16x1xf32>
    %88 = arith.mulf %83, %83 : vector<16x128xf32>
    %cst_39 = arith.constant dense<0.000000e+00> : vector<16xf32>
    %89 = vector.multi_reduction <add>, %88, %cst_39 [1] : vector<16x128xf32> to vector<16xf32>
    %90 = vector.shape_cast %89 : vector<16xf32> to vector<16x1xf32>
    %cst_40 = arith.constant 3.125000e-02 : f32
    %91 = vector.broadcast %cst_40 : f32 to vector<16x1xf32>
    %92 = arith.mulf %90, %91 : vector<16x1xf32>
    %93 = arith.mulf %87, %87 : vector<16x1xf32>
    %94 = arith.subf %92, %93 : vector<16x1xf32>
    %95 = vector.broadcast %87 : vector<16x1xf32> to vector<16x128xf32>
    %96 = arith.subf %83, %95 : vector<16x128xf32>
    %cst_41 = arith.constant 9.99999974E-6 : f32
    %97 = vector.broadcast %cst_41 : f32 to vector<16x1xf32>
    %98 = arith.addf %94, %97 : vector<16x1xf32>
    %99 = math.rsqrt %98 : vector<16x1xf32>
    %100 = vector.broadcast %99 : vector<16x1xf32> to vector<16x128xf32>
    %101 = arith.mulf %96, %100 : vector<16x128xf32>
    %c0_42 = arith.constant 0 : index
    %c0_43 = arith.constant 0 : index
    %c0_44 = arith.constant 0 : index
    %102 = vector.load %arg11[%c0_42, %c0_43, %c0_44] : memref<1x1x128xf32, #tpu.memory_space<vmem>>, vector<1x1x128xf32>
    %103 = vector.shape_cast %102 : vector<1x1x128xf32> to vector<1x128xf32>
    %104 = vector.broadcast %103 : vector<1x128xf32> to vector<16x128xf32>
    %105 = arith.mulf %101, %104 : vector<16x128xf32>
    %c0_45 = arith.constant 0 : index
    %c0_46 = arith.constant 0 : index
    %c0_47 = arith.constant 0 : index
    %106 = vector.load %arg12[%c0_45, %c0_46, %c0_47] : memref<1x1x128xf32, #tpu.memory_space<vmem>>, vector<1x1x128xf32>
    %107 = vector.shape_cast %106 : vector<1x1x128xf32> to vector<1x128xf32>
    %108 = vector.broadcast %107 : vector<1x128xf32> to vector<16x128xf32>
    %109 = arith.addf %105, %108 : vector<16x128xf32>
    %110 = vector.shape_cast %109 : vector<16x128xf32> to vector<2x8x128xf32>
    %c0_48 = arith.constant 0 : index
    %c0_49 = arith.constant 0 : index
    %c0_50 = arith.constant 0 : index
    %111 = vector.load %arg13[%c0_48, %c0_49, %c0_50] : memref<2x8x128xf32, #tpu.memory_space<vmem>>, vector<2x8x128xf32>
    tpu.vector_store %arg13[%c0_48, %c0_49, %c0_50], %110 {strides = array<i32>} : memref<2x8x128xf32, #tpu.memory_space<vmem>>, vector<2x8x128xf32>,
    return
  }
  func.func @transform_0(%arg0: i32, %arg1: i32) -> (i32, i32, i32) {
    %c0_i32 = arith.constant 0 : i32
    %c0_i32_0 = arith.constant 0 : i32
    %c0_i32_1 = arith.constant 0 : i32
    return %arg0, %c0_i32, %c0_i32_0 : i32, i32, i32
  }
  func.func @transform_1(%arg0: i32, %arg1: i32) -> (i32, i32) {
    %c0_i32 = arith.constant 0 : i32
    %c0_i32_0 = arith.constant 0 : i32
    %c0_i32_1 = arith.constant 0 : i32
    return %c0_i32, %c0_i32_0 : i32, i32
  }
  func.func @transform_2(%arg0: i32, %arg1: i32) -> (i32, i32, i32) {
    %c0_i32 = arith.constant 0 : i32
    %c0_i32_0 = arith.constant 0 : i32
    %c0_i32_1 = arith.constant 0 : i32
    return %arg1, %c0_i32, %c0_i32_0 : i32, i32, i32
  }
  func.func @transform_3(%arg0: i32, %arg1: i32) -> (i32, i32, i32) {
    %c0_i32 = arith.constant 0 : i32
    %c0_i32_0 = arith.constant 0 : i32
    %c0_i32_1 = arith.constant 0 : i32
    return %arg1, %c0_i32, %c0_i32_0 : i32, i32, i32
  }
  func.func @transform_4(%arg0: i32, %arg1: i32) -> (i32, i32, i32) {
    %c0_i32 = arith.constant 0 : i32
    %c0_i32_0 = arith.constant 0 : i32
    %c0_i32_1 = arith.constant 0 : i32
    return %arg1, %c0_i32, %c0_i32_0 : i32, i32, i32
  }
  func.func @transform_5(%arg0: i32, %arg1: i32) -> (i32, i32, i32) {
    %c0_i32 = arith.constant 0 : i32
    %c0_i32_0 = arith.constant 0 : i32
    %c0_i32_1 = arith.constant 0 : i32
    return %arg1, %c0_i32, %c0_i32_0 : i32, i32, i32
  }
  func.func @transform_6(%arg0: i32, %arg1: i32) -> (i32, i32, i32) {
    %c0_i32 = arith.constant 0 : i32
    %c0_i32_0 = arith.constant 0 : i32
    %c0_i32_1 = arith.constant 0 : i32
    return %arg1, %c0_i32, %c0_i32_0 : i32, i32, i32
  }
  func.func @transform_7(%arg0: i32, %arg1: i32) -> (i32, i32, i32) {
    %c0_i32 = arith.constant 0 : i32
    %c0_i32_0 = arith.constant 0 : i32
    %c0_i32_1 = arith.constant 0 : i32
    return %arg1, %c0_i32, %c0_i32_0 : i32, i32, i32
  }
  func.func @transform_8(%arg0: i32, %arg1: i32) -> (i32, i32, i32) {
    %c0_i32 = arith.constant 0 : i32
    %c0_i32_0 = arith.constant 0 : i32
    %c0_i32_1 = arith.constant 0 : i32
    return %arg1, %c0_i32, %c0_i32_0 : i32, i32, i32
  }
  func.func @transform_9(%arg0: i32, %arg1: i32) -> (i32, i32, i32) {
    %c0_i32 = arith.constant 0 : i32
    %c0_i32_0 = arith.constant 0 : i32
    %c0_i32_1 = arith.constant 0 : i32
    return %arg1, %c0_i32, %c0_i32_0 : i32, i32, i32
  }
  func.func @transform_10(%arg0: i32, %arg1: i32) -> (i32, i32, i32) {
    %c0_i32 = arith.constant 0 : i32
    %c0_i32_0 = arith.constant 0 : i32
    %c0_i32_1 = arith.constant 0 : i32
    return %arg1, %c0_i32, %c0_i32_0 : i32, i32, i32
  }
  func.func @transform_11(%arg0: i32, %arg1: i32) -> (i32, i32, i32) {
    %c0_i32 = arith.constant 0 : i32
    %c0_i32_0 = arith.constant 0 : i32
    %c0_i32_1 = arith.constant 0 : i32
    return %arg0, %c0_i32, %c0_i32_0 : i32, i32, i32
  }
}

</mosaic_0001>

<llo_original>
// kernel: tpu_custom_call.1
$region0: #{tpu_custom_call.1}
  #allocation0 [shape = 'u32[]', space=smem, size = 0x4, offset = 0x4, fixed_abs, tag = 'smem constant byte address 0x4 - core index']
  #allocation1 [shape = 'u32[144,128]{1,0:T(1,128)}', space=vmem, size = 0x12000, scoped, tag = 'internal scratch']
  %s0 = inlined_call_operand.hbm [shape: f32[2,8,128], index: 0, kind: input, shape index: {}]
  %s1 = inlined_call_operand.hbm [shape: f32[8,128], index: 1, kind: input, shape index: {}]
  %s2 = inlined_call_operand.hbm [shape: bf16[2,128,384], index: 2, kind: input, shape index: {}]
  %s3 = inlined_call_operand.vmem [shape: f32[2,1,128], index: 3, kind: input, shape index: {}]
  %s4 = inlined_call_operand.vmem [shape: f32[2,1,128], index: 4, kind: input, shape index: {}]
  %s5 = inlined_call_operand.hbm [shape: bf16[2,128,128], index: 5, kind: input, shape index: {}]
  %s6 = inlined_call_operand.vmem [shape: f32[2,1,128], index: 6, kind: input, shape index: {}]
  %s7 = inlined_call_operand.hbm [shape: bf16[2,128,128], index: 7, kind: input, shape index: {}]
  %s8 = inlined_call_operand.vmem [shape: f32[2,1,128], index: 8, kind: input, shape index: {}]
  %s9 = inlined_call_operand.vmem [shape: f32[2,1,128], index: 9, kind: input, shape index: {}]
  %s10 = inlined_call_operand.vmem [shape: f32[2,1,128], index: 10, kind: input, shape index: {}]
  %s11 = inlined_call_operand.hbm [shape: f32[2,8,128], index: 11, kind: output, shape index: {}]
  %s12 = sld [smem:[#allocation0]]
  $region101: #{tpu_custom_call.1} parent=0
    _
  %s14 = ssub.s32 1, %s12
  %s15 = scalar_select 0, %s14, %s12
  $region1: #{tpu_custom_call.1} parent=0
    #allocation2 [shape = 'u8[8192]{0}', space=vmem, size = 0x2000, scoped, tag = 'input window, operand 0, single buffered']
    #allocation3 [shape = 's32[2]{0}', space=sflag, size = 0x8, scoped, tag = 'scoped memory for tpu_custom_call.1']
    #allocation4 [shape = 's32[2]{0}', space=sflag, size = 0x8, scoped, tag = 'scoped memory for tpu_custom_call.1']
    #allocation5 [shape = 'u8[4096]{0}', space=vmem, size = 0x1000, scoped, tag = 'input window, operand 1, single buffered']
    #allocation6 [shape = 's32[1]{0}', space=sflag, size = 0x4, scoped, tag = 'scoped memory for tpu_custom_call.1']
    #allocation7 [shape = 'u8[196608]{0}', space=vmem, size = 0x30000, scoped, tag = 'input window, operand 2']
    #allocation8 [shape = 'u8[65536]{0}', space=vmem, size = 0x10000, scoped, tag = 'input window, operand 5']
    #allocation9 [shape = 'u8[65536]{0}', space=vmem, size = 0x10000, scoped, tag = 'input window, operand 7']
    #allocation10 [shape = 'u8[8192]{0}', space=vmem, size = 0x2000, scoped, tag = 'output window, operand 0, single buffered']
    %16 = vsyncpa [#allocation3], 0
    %17 = vsyncpa [#allocation6], 0
    %18 = vsyncpa [#allocation4], 0
    loop: start=0, step=1, limit=4
    $region2: #{tpu_custom_call.1} parent=1 // loop_pre_header
      _
    $region3: #{tpu_custom_call.1} parent=1 // loop_header
      %s20 = sphi 0, %s24
      %p21 = scmp.ge.s32.totalorder %s20, 4
      %s27 = sphi 0, %s39
      %s28 = sphi 0, %s35
      %s29 = sphi 0, %s27
      %s30 = sphi 0, %s28
      %s31 = sphi 0, %s29
      %s32 = sphi 0, %s30
      %s42 = sphi 0, %s44
      %s45 = sphi 0, %s42
      %s46 = sphi 0, %s45
      %s62 = sphi 0, %s46
      %s66 = sphi 0, %s66
      %s68 = sphi 0, %s66
      %s69 = sphi 0, %s68
      %s83 = sphi 0, %s69
      %s89 = sphi 0, %s91
      %s92 = sphi 0, %s89
      %s93 = sphi 0, %s92
      %s109 = sphi 0, %s93
      %s115 = sphi 0, %s117
      %s118 = sphi 0, %s115
      %s119 = sphi 0, %s118
      %s135 = sphi 0, %s119
      %s141 = sphi 0, %s143
      %s144 = sphi 0, %s141
      %s145 = sphi 0, %s144
      %s161 = sphi 0, %s145
      %s167 = sphi 0, %s169
      %s170 = sphi 0, %s167
      %s171 = sphi 0, %s170
      %s187 = sphi 0, %s171
      %s193 = sphi 0, %s195
      %s196 = sphi 0, %s193
      %s197 = sphi 0, %s196
      %s213 = sphi 0, %s197
      %s219 = sphi 0, %s221
      %s222 = sphi 0, %s219
      %s223 = sphi 0, %s222
      %s239 = sphi 0, %s223
      %s245 = sphi 0, %s247
      %s248 = sphi 0, %s245
      %s249 = sphi 0, %s248
      %s265 = sphi 0, %s249
      %s271 = sphi 0, %s273
      %s274 = sphi 0, %s271
      %s275 = sphi 0, %s274
      %s291 = sphi 0, %s275
      %s297 = sphi 0, %s299
      %s300 = sphi 0, %s297
      %s301 = sphi 0, %s300
      %s317 = sphi 0, %s301
      %s323 = sphi 0, %s325
      %s326 = sphi 0, %s323
      %s327 = sphi 0, %s326
      %s343 = sphi 0, %s327
    $region4: #{tpu_custom_call.1} parent=1 // loop_header_branch
      %23 = sbr.rel (%p21) target = $region8
    $region5: #{tpu_custom_call.1} parent=1 // loop_body
      %s25 = ssub.s32 %s20, 1
      %s26 = ssub.s32 %s20, 2
      %s33 = sadd.s32 1, %s28
      %p34 = scmp.ge.s32.totalorder %s33, 2
      %s35 = scalar_select %p34, 0, %s33
      %s36 = sadd.s32 1, %s27
      %s37 = scalar_select %p34, %s36, %s27
      %p38 = scmp.ge.s32.totalorder %s37, 1
      %s39 = scalar_select %p38, 0, %s37
      %s40 = ssub.s32 %s27, %s39
      %p41 = scmp.eq.s32.totalorder %s40, 0
      %s43 = sadd.s32 %s42, 1
      %s44 = scalar_select %p41, %s42, %s43
      %p47 = pneg %p41
      %p48 = scmp.eq.s32.totalorder %s20, 1
      %p49 = por %p47, %p48
      %p50 = scmp.ne.s32.totalorder %s42, %s45
      %p51 = scmp.eq.s32.totalorder %s20, 0
      %p52 = por %p50, %p51
      %p53 = scmp.ne.s32.totalorder %s42, %s45
      %p54 = scmp.eq.s32.totalorder %s25, 1
      %p55 = por %p53, %p54
      %p56 = scmp.ne.s32.totalorder %s45, %s46
      %p57 = scmp.eq.s32.totalorder %s25, 0
      %p58 = por %p56, %p57
      %p59 = scmp.ne.s32.totalorder %s45, %s46
      %p60 = scmp.eq.s32.totalorder %s26, 1
      %p61 = por %p59, %p60
      %p63 = scmp.ne.s32.totalorder %s46, %s62
      %p64 = scmp.eq.s32.totalorder %s26, 0
      %p65 = por %p63, %p64
      %s67 = sadd.s32 %s66, 1
      %p70 = scmp.eq.s32.totalorder %s20, 1
      %p71 = scmp.ne.s32.totalorder %s66, %s68
      %p72 = scmp.eq.s32.totalorder %s20, 0
      %p73 = por %p71, %p72
      %p74 = scmp.ne.s32.totalorder %s66, %s68
      %p75 = scmp.eq.s32.totalorder %s25, 1
      %p76 = por %p74, %p75
      %p77 = scmp.ne.s32.totalorder %s68, %s69
      %p78 = scmp.eq.s32.totalorder %s25, 0
      %p79 = por %p77, %p78
      %p80 = scmp.ne.s32.totalorder %s68, %s69
      %p81 = scmp.eq.s32.totalorder %s26, 1
      %p82 = por %p80, %p81
      %p84 = scmp.ne.s32.totalorder %s69, %s83
      %p85 = scmp.eq.s32.totalorder %s26, 0
      %p86 = por %p84, %p85
      %s87 = ssub.s32 %s28, %s35
      %p88 = scmp.eq.s32.totalorder %s87, 0
      %s90 = sadd.s32 %s89, 1
      %s91 = scalar_select %p88, %s89, %s90
      %p94 = pneg %p88
      %p95 = scmp.eq.s32.totalorder %s20, 1
      %p96 = por %p94, %p95
      %p97 = scmp.ne.s32.totalorder %s89, %s92
      %p98 = scmp.eq.s32.totalorder %s20, 0
      %p99 = por %p97, %p98
      %p100 = scmp.ne.s32.totalorder %s89, %s92
      %p101 = scmp.eq.s32.totalorder %s25, 1
      %p102 = por %p100, %p101
      %p103 = scmp.ne.s32.totalorder %s92, %s93
      %p104 = scmp.eq.s32.totalorder %s25, 0
      %p105 = por %p103, %p104
      %p106 = scmp.ne.s32.totalorder %s92, %s93
      %p107 = scmp.eq.s32.totalorder %s26, 1
      %p108 = por %p106, %p107
      %p110 = scmp.ne.s32.totalorder %s93, %s109
      %p111 = scmp.eq.s32.totalorder %s26, 0
      %p112 = por %p110, %p111
      %s113 = ssub.s32 %s28, %s35
      %p114 = scmp.eq.s32.totalorder %s113, 0
      %s116 = sadd.s32 %s115, 1
      %s117 = scalar_select %p114, %s115, %s116
      %p120 = pneg %p114
      %p121 = scmp.eq.s32.totalorder %s20, 1
      %p122 = por %p120, %p121
      %p123 = scmp.ne.s32.totalorder %s115, %s118
      %p124 = scmp.eq.s32.totalorder %s20, 0
      %p125 = por %p123, %p124
      %p126 = scmp.ne.s32.totalorder %s115, %s118
      %p127 = scmp.eq.s32.totalorder %s25, 1
      %p128 = por %p126, %p127
      %p129 = scmp.ne.s32.totalorder %s118, %s119
      %p130 = scmp.eq.s32.totalorder %s25, 0
      %p131 = por %p129, %p130
      %p132 = scmp.ne.s32.totalorder %s118, %s119
      %p133 = scmp.eq.s32.totalorder %s26, 1
      %p134 = por %p132, %p133
      %p136 = scmp.ne.s32.totalorder %s119, %s135
      %p137 = scmp.eq.s32.totalorder %s26, 0
      %p138 = por %p136, %p137
      %s139 = ssub.s32 %s28, %s35
      %p140 = scmp.eq.s32.totalorder %s139, 0
      %s142 = sadd.s32 %s141, 1
      %s143 = scalar_select %p140, %s141, %s142
      %p146 = pneg %p140
      %p147 = scmp.eq.s32.totalorder %s20, 1
      %p148 = por %p146, %p147
      %p149 = scmp.ne.s32.totalorder %s141, %s144
      %p150 = scmp.eq.s32.totalorder %s20, 0
      %p151 = por %p149, %p150
      %p152 = scmp.ne.s32.totalorder %s141, %s144
      %p153 = scmp.eq.s32.totalorder %s25, 1
      %p154 = por %p152, %p153
      %p155 = scmp.ne.s32.totalorder %s144, %s145
      %p156 = scmp.eq.s32.totalorder %s25, 0
      %p157 = por %p155, %p156
      %p158 = scmp.ne.s32.totalorder %s144, %s145
      %p159 = scmp.eq.s32.totalorder %s26, 1
      %p160 = por %p158, %p159
      %p162 = scmp.ne.s32.totalorder %s145, %s161
      %p163 = scmp.eq.s32.totalorder %s26, 0
      %p164 = por %p162, %p163
      %s165 = ssub.s32 %s28, %s35
      %p166 = scmp.eq.s32.totalorder %s165, 0
      %s168 = sadd.s32 %s167, 1
      %s169 = scalar_select %p166, %s167, %s168
      %p172 = pneg %p166
      %p173 = scmp.eq.s32.totalorder %s20, 1
      %p174 = por %p172, %p173
      %p175 = scmp.ne.s32.totalorder %s167, %s170
      %p176 = scmp.eq.s32.totalorder %s20, 0
      %p177 = por %p175, %p176
      %p178 = scmp.ne.s32.totalorder %s167, %s170
      %p179 = scmp.eq.s32.totalorder %s25, 1
      %p180 = por %p178, %p179
      %p181 = scmp.ne.s32.totalorder %s170, %s171
      %p182 = scmp.eq.s32.totalorder %s25, 0
      %p183 = por %p181, %p182
      %p184 = scmp.ne.s32.totalorder %s170, %s171
      %p185 = scmp.eq.s32.totalorder %s26, 1
      %p186 = por %p184, %p185
      %p188 = scmp.ne.s32.totalorder %s171, %s187
      %p189 = scmp.eq.s32.totalorder %s26, 0
      %p190 = por %p188, %p189
      %s191 = ssub.s32 %s28, %s35
      %p192 = scmp.eq.s32.totalorder %s191, 0
      %s194 = sadd.s32 %s193, 1
      %s195 = scalar_select %p192, %s193, %s194
      %p198 = pneg %p192
      %p199 = scmp.eq.s32.totalorder %s20, 1
      %p200 = por %p198, %p199
      %p201 = scmp.ne.s32.totalorder %s193, %s196
      %p202 = scmp.eq.s32.totalorder %s20, 0
      %p203 = por %p201, %p202
      %p204 = scmp.ne.s32.totalorder %s193, %s196
      %p205 = scmp.eq.s32.totalorder %s25, 1
      %p206 = por %p204, %p205
      %p207 = scmp.ne.s32.totalorder %s196, %s197
      %p208 = scmp.eq.s32.totalorder %s25, 0
      %p209 = por %p207, %p208
      %p210 = scmp.ne.s32.totalorder %s196, %s197
      %p211 = scmp.eq.s32.totalorder %s26, 1
      %p212 = por %p210, %p211
      %p214 = scmp.ne.s32.totalorder %s197, %s213
      %p215 = scmp.eq.s32.totalorder %s26, 0
      %p216 = por %p214, %p215
      %s217 = ssub.s32 %s28, %s35
      %p218 = scmp.eq.s32.totalorder %s217, 0
      %s220 = sadd.s32 %s219, 1
      %s221 = scalar_select %p218, %s219, %s220
      %p224 = pneg %p218
      %p225 = scmp.eq.s32.totalorder %s20, 1
      %p226 = por %p224, %p225
      %p227 = scmp.ne.s32.totalorder %s219, %s222
      %p228 = scmp.eq.s32.totalorder %s20, 0
      %p229 = por %p227, %p228
      %p230 = scmp.ne.s32.totalorder %s219, %s222
      %p231 = scmp.eq.s32.totalorder %s25, 1
      %p232 = por %p230, %p231
      %p233 = scmp.ne.s32.totalorder %s222, %s223
      %p234 = scmp.eq.s32.totalorder %s25, 0
      %p235 = por %p233, %p234
      %p236 = scmp.ne.s32.totalorder %s222, %s223
      %p237 = scmp.eq.s32.totalorder %s26, 1
      %p238 = por %p236, %p237
      %p240 = scmp.ne.s32.totalorder %s223, %s239
      %p241 = scmp.eq.s32.totalorder %s26, 0
      %p242 = por %p240, %p241
      %s243 = ssub.s32 %s28, %s35
      %p244 = scmp.eq.s32.totalorder %s243, 0
      %s246 = sadd.s32 %s245, 1
      %s247 = scalar_select %p244, %s245, %s246
      %p250 = pneg %p244
      %p251 = scmp.eq.s32.totalorder %s20, 1
      %p252 = por %p250, %p251
      %p253 = scmp.ne.s32.totalorder %s245, %s248
      %p254 = scmp.eq.s32.totalorder %s20, 0
      %p255 = por %p253, %p254
      %p256 = scmp.ne.s32.totalorder %s245, %s248
      %p257 = scmp.eq.s32.totalorder %s25, 1
      %p258 = por %p256, %p257
      %p259 = scmp.ne.s32.totalorder %s248, %s249
      %p260 = scmp.eq.s32.totalorder %s25, 0
      %p261 = por %p259, %p260
      %p262 = scmp.ne.s32.totalorder %s248, %s249
      %p263 = scmp.eq.s32.totalorder %s26, 1
      %p264 = por %p262, %p263
      %p266 = scmp.ne.s32.totalorder %s249, %s265
      %p267 = scmp.eq.s32.totalorder %s26, 0
      %p268 = por %p266, %p267
      %s269 = ssub.s32 %s28, %s35
      %p270 = scmp.eq.s32.totalorder %s269, 0
      %s272 = sadd.s32 %s271, 1
      %s273 = scalar_select %p270, %s271, %s272
      %p276 = pneg %p270
      %p277 = scmp.eq.s32.totalorder %s20, 1
      %p278 = por %p276, %p277
      %p279 = scmp.ne.s32.totalorder %s271, %s274
      %p280 = scmp.eq.s32.totalorder %s20, 0
      %p281 = por %p279, %p280
      %p282 = scmp.ne.s32.totalorder %s271, %s274
      %p283 = scmp.eq.s32.totalorder %s25, 1
      %p284 = por %p282, %p283
      %p285 = scmp.ne.s32.totalorder %s274, %s275
      %p286 = scmp.eq.s32.totalorder %s25, 0
      %p287 = por %p285, %p286
      %p288 = scmp.ne.s32.totalorder %s274, %s275
      %p289 = scmp.eq.s32.totalorder %s26, 1
      %p290 = por %p288, %p289
      %p292 = scmp.ne.s32.totalorder %s275, %s291
      %p293 = scmp.eq.s32.totalorder %s26, 0
      %p294 = por %p292, %p293
      %s295 = ssub.s32 %s28, %s35
      %p296 = scmp.eq.s32.totalorder %s295, 0
      %s298 = sadd.s32 %s297, 1
      %s299 = scalar_select %p296, %s297, %s298
      %p302 = pneg %p296
      %p303 = scmp.eq.s32.totalorder %s20, 1
      %p304 = por %p302, %p303
      %p305 = scmp.ne.s32.totalorder %s297, %s300
      %p306 = scmp.eq.s32.totalorder %s20, 0
      %p307 = por %p305, %p306
      %p308 = scmp.ne.s32.totalorder %s297, %s300
      %p309 = scmp.eq.s32.totalorder %s25, 1
      %p310 = por %p308, %p309
      %p311 = scmp.ne.s32.totalorder %s300, %s301
      %p312 = scmp.eq.s32.totalorder %s25, 0
      %p313 = por %p311, %p312
      %p314 = scmp.ne.s32.totalorder %s300, %s301
      %p315 = scmp.eq.s32.totalorder %s26, 1
      %p316 = por %p314, %p315
      %p318 = scmp.ne.s32.totalorder %s301, %s317
      %p319 = scmp.eq.s32.totalorder %s26, 0
      %p320 = por %p318, %p319
      %s321 = ssub.s32 %s27, %s39
      %p322 = scmp.eq.s32.totalorder %s321, 0
      %s324 = sadd.s32 %s323, 1
      %s325 = scalar_select %p322, %s323, %s324
      %p328 = pneg %p322
      %p329 = scmp.eq.s32.totalorder %s20, 1
      %p330 = por %p328, %p329
      %p331 = scmp.ne.s32.totalorder %s323, %s326
      %p332 = scmp.eq.s32.totalorder %s20, 0
      %p333 = por %p331, %p332
      %p334 = scmp.ne.s32.totalorder %s323, %s326
      %p335 = scmp.eq.s32.totalorder %s25, 1
      %p336 = por %p334, %p335
      %p337 = scmp.ne.s32.totalorder %s326, %s327
      %p338 = scmp.eq.s32.totalorder %s25, 0
      %p339 = por %p337, %p338
      %p340 = scmp.ne.s32.totalorder %s326, %s327
      %p341 = scmp.eq.s32.totalorder %s26, 1
      %p342 = por %p340, %p341
      %p344 = scmp.ne.s32.totalorder %s327, %s343
      %p345 = scmp.eq.s32.totalorder %s26, 0
      %p346 = por %p344, %p345
      %p347 = scmp.le.s32.totalorder 1, %s20
      %p348 = scmp.lt.s32.totalorder %s20, 3
      %p349 = pnand %p347, %p348
      %p350 = pneg %p349
      // Predicated region
      $region9: #{tpu_custom_call.1} parent=5 // pred_check
        _
      $region10: #{tpu_custom_call.1} parent=5 // pred_check_branch
        %352 = sbr.rel (%p349) target = $region12
      $region11: #{tpu_custom_call.1} parent=5 // pred_region
        %s353 = ssub.s32 %s20, 1
        // Predicated region
        $region13: #{tpu_custom_call.1} parent=11 // pred_check
          %p354 = pneg %p58
        $region14: #{tpu_custom_call.1} parent=11 // pred_check_branch
          %356 = sbr.rel (%p354) target = $region16
        $region15: #{tpu_custom_call.1} parent=11 // pred_region
          %s357 = smul.u32 2, %s29
          %s359 = ssub.s32 256, 256
          %360 = vsyncadd [#allocation3], %s359
          %s361 = smul.addr %s357, 128
          %s362 = scalar_lea.hbm %s0, %s361
          %s363 = sshll.u32 [#allocation2], 4
          %s364 = int_to_ptr.vmem [resolvable:$true] %s363
          %369 = dma.hbm_to_vmem [thread:$0]  %s362, 256, %s364, [#allocation3], 128, 128, 8
        $region16: #{tpu_custom_call.1} parent=11 // pred_fallthru
          _
        // Predicated region
        $region17: #{tpu_custom_call.1} parent=11 // pred_check
          %p370 = pneg %p79
        $region18: #{tpu_custom_call.1} parent=11 // pred_check_branch
          %372 = sbr.rel (%p370) target = $region20
        $region19: #{tpu_custom_call.1} parent=11 // pred_region
          %s374 = ssub.s32 128, 128
          %375 = vsyncadd [#allocation6], %s374
          %s377 = sshll.u32 [#allocation5], 4
          %s378 = int_to_ptr.vmem [resolvable:$true] %s377
          %380 = dma.hbm_to_vmem [thread:$0]  %s1, 128, %s378, [#allocation6]
        $region20: #{tpu_custom_call.1} parent=11 // pred_fallthru
          _
      $region12: #{tpu_custom_call.1} parent=5 // pred_fallthru
        _
      %p381 = scmp.lt.s32.totalorder %s20, 2
      // Predicated region
      $region21: #{tpu_custom_call.1} parent=5 // pred_check
        %p382 = pneg %p381
      $region22: #{tpu_custom_call.1} parent=5 // pred_check_branch
        %384 = sbr.rel (%p382) target = $region24
      $region23: #{tpu_custom_call.1} parent=5 // pred_region
        // Predicated region
        $region25: #{tpu_custom_call.1} parent=23 // pred_check
          %p385 = pneg %p99
        $region26: #{tpu_custom_call.1} parent=23 // pred_check_branch
          %387 = sbr.rel (%p385) target = $region28
        $region27: #{tpu_custom_call.1} parent=23 // pred_region
          %s388 = sand.u32 %s20, 1
          %s389 = scalar_lea.sflag [#allocation3], %s388
          %s390 = sand.u32 %s89, 1
          %s391 = smul.addr %s390, 192
          %s392 = scalar_lea.vmem [#allocation7], %s391
          %s394 = ssub.s32 3072, 3072
          %395 = vsyncadd %s389, %s394
          %s396 = smul.addr %s28, 48
          %s397 = smul.addr %s396, 64
          %s398 = scalar_lea.hbm %s2, %s397
          %s399 = sshll.u32 %s392, 4
          %s400 = int_to_ptr.vmem [resolvable:$true] %s399
          %405 = dma.hbm_to_vmem [thread:$0]  %s398, 3072, %s400, %s389, 192, 192, 12
        $region28: #{tpu_custom_call.1} parent=23 // pred_fallthru
          _
        // Predicated region
        $region29: #{tpu_custom_call.1} parent=23 // pred_check
          %p406 = pneg %p125
        $region30: #{tpu_custom_call.1} parent=23 // pred_check_branch
          %408 = sbr.rel (%p406) target = $region32
        $region31: #{tpu_custom_call.1} parent=23 // pred_region
          %p409 = scmp.lt.s32.totalorder %s28, 1
          %s410 = scalar_select %p409, %s28, 1
          %s411 = scalar_lea.vmem %s3, %s410
        $region32: #{tpu_custom_call.1} parent=23 // pred_fallthru
          _
        // Predicated region
        $region33: #{tpu_custom_call.1} parent=23 // pred_check
          %p412 = pneg %p151
        $region34: #{tpu_custom_call.1} parent=23 // pred_check_branch
          %414 = sbr.rel (%p412) target = $region36
        $region35: #{tpu_custom_call.1} parent=23 // pred_region
          %p415 = scmp.lt.s32.totalorder %s28, 1
          %s416 = scalar_select %p415, %s28, 1
          %s417 = scalar_lea.vmem %s4, %s416
        $region36: #{tpu_custom_call.1} parent=23 // pred_fallthru
          _
        // Predicated region
        $region37: #{tpu_custom_call.1} parent=23 // pred_check
          %p418 = pneg %p177
        $region38: #{tpu_custom_call.1} parent=23 // pred_check_branch
          %420 = sbr.rel (%p418) target = $region40
        $region39: #{tpu_custom_call.1} parent=23 // pred_region
          %s421 = sand.u32 %s20, 1
          %s422 = scalar_lea.sflag [#allocation3], %s421
          %s423 = sand.u32 %s167, 1
          %s424 = smul.addr %s423, 64
          %s425 = scalar_lea.vmem [#allocation8], %s424
          %s427 = ssub.s32 1024, 1024
          %428 = vsyncadd %s422, %s427
          %s429 = smul.addr %s28, 16
          %s430 = smul.addr %s429, 64
          %s431 = scalar_lea.hbm %s5, %s430
          %s432 = sshll.u32 %s425, 4
          %s433 = int_to_ptr.vmem [resolvable:$true] %s432
          %438 = dma.hbm_to_vmem [thread:$0]  %s431, 1024, %s433, %s422, 64, 64, 4
        $region40: #{tpu_custom_call.1} parent=23 // pred_fallthru
          _
        // Predicated region
        $region41: #{tpu_custom_call.1} parent=23 // pred_check
          %p439 = pneg %p203
        $region42: #{tpu_custom_call.1} parent=23 // pred_check_branch
          %441 = sbr.rel (%p439) target = $region44
        $region43: #{tpu_custom_call.1} parent=23 // pred_region
          %p442 = scmp.lt.s32.totalorder %s28, 1
          %s443 = scalar_select %p442, %s28, 1
          %s444 = scalar_lea.vmem %s6, %s443
        $region44: #{tpu_custom_call.1} parent=23 // pred_fallthru
          _
        // Predicated region
        $region45: #{tpu_custom_call.1} parent=23 // pred_check
          %p445 = pneg %p229
        $region46: #{tpu_custom_call.1} parent=23 // pred_check_branch
          %447 = sbr.rel (%p445) target = $region48
        $region47: #{tpu_custom_call.1} parent=23 // pred_region
          %s448 = sand.u32 %s20, 1
          %s449 = scalar_lea.sflag [#allocation3], %s448
          %s450 = sand.u32 %s219, 1
          %s451 = smul.addr %s450, 64
          %s452 = scalar_lea.vmem [#allocation9], %s451
          %s454 = ssub.s32 1024, 1024
          %455 = vsyncadd %s449, %s454
          %s456 = smul.addr %s28, 16
          %s457 = smul.addr %s456, 64
          %s458 = scalar_lea.hbm %s7, %s457
          %s459 = sshll.u32 %s452, 4
          %s460 = int_to_ptr.vmem [resolvable:$true] %s459
          %465 = dma.hbm_to_vmem [thread:$0]  %s458, 1024, %s460, %s449, 64, 64, 4
        $region48: #{tpu_custom_call.1} parent=23 // pred_fallthru
          _
        // Predicated region
        $region49: #{tpu_custom_call.1} parent=23 // pred_check
          %p466 = pneg %p255
        $region50: #{tpu_custom_call.1} parent=23 // pred_check_branch
          %468 = sbr.rel (%p466) target = $region52
        $region51: #{tpu_custom_call.1} parent=23 // pred_region
          %p469 = scmp.lt.s32.totalorder %s28, 1
          %s470 = scalar_select %p469, %s28, 1
          %s471 = scalar_lea.vmem %s8, %s470
        $region52: #{tpu_custom_call.1} parent=23 // pred_fallthru
          _
        // Predicated region
        $region53: #{tpu_custom_call.1} parent=23 // pred_check
          %p472 = pneg %p281
        $region54: #{tpu_custom_call.1} parent=23 // pred_check_branch
          %474 = sbr.rel (%p472) target = $region56
        $region55: #{tpu_custom_call.1} parent=23 // pred_region
          %p475 = scmp.lt.s32.totalorder %s28, 1
          %s476 = scalar_select %p475, %s28, 1
          %s477 = scalar_lea.vmem %s9, %s476
        $region56: #{tpu_custom_call.1} parent=23 // pred_fallthru
          _
        // Predicated region
        $region57: #{tpu_custom_call.1} parent=23 // pred_check
          %p478 = pneg %p307
        $region58: #{tpu_custom_call.1} parent=23 // pred_check_branch
          %480 = sbr.rel (%p478) target = $region60
        $region59: #{tpu_custom_call.1} parent=23 // pred_region
          %p481 = scmp.lt.s32.totalorder %s28, 1
          %s482 = scalar_select %p481, %s28, 1
          %s483 = scalar_lea.vmem %s10, %s482
        $region60: #{tpu_custom_call.1} parent=23 // pred_fallthru
          _
      $region24: #{tpu_custom_call.1} parent=5 // pred_fallthru
        _
      %p484 = scmp.le.s32.totalorder 1, %s20
      %p485 = scmp.lt.s32.totalorder %s20, 3
      %p486 = pnand %p484, %p485
      %p487 = pneg %p486
      // Predicated region
      $region61: #{tpu_custom_call.1} parent=5 // pred_check
        _
      $region62: #{tpu_custom_call.1} parent=5 // pred_check_branch
        %489 = sbr.rel (%p486) target = $region64
      $region63: #{tpu_custom_call.1} parent=5 // pred_region
        %s490 = ssub.s32 %s20, 1
        // Predicated region
        $region65: #{tpu_custom_call.1} parent=63 // pred_check
          %p491 = pneg %p58
        $region66: #{tpu_custom_call.1} parent=63 // pred_check_branch
          %493 = sbr.rel (%p491) target = $region68
        $region67: #{tpu_custom_call.1} parent=63 // pred_region
          %494 = dma.done [#allocation3], 256
        $region68: #{tpu_custom_call.1} parent=63 // pred_fallthru
          _
        // Predicated region
        $region69: #{tpu_custom_call.1} parent=63 // pred_check
          %p495 = pneg %p79
        $region70: #{tpu_custom_call.1} parent=63 // pred_check_branch
          %497 = sbr.rel (%p495) target = $region72
        $region71: #{tpu_custom_call.1} parent=63 // pred_region
          %498 = dma.done [#allocation6], 128
        $region72: #{tpu_custom_call.1} parent=63 // pred_fallthru
          _
        %s499 = sand.u32 %s25, 1
        %s500 = scalar_lea.sflag [#allocation3], %s499
        %s501 = sand.u32 %s92, 1
        %s502 = smul.addr %s501, 192
        %s503 = scalar_lea.vmem [#allocation7], %s502
        // Predicated region
        $region73: #{tpu_custom_call.1} parent=63 // pred_check
          %p504 = pneg %p105
        $region74: #{tpu_custom_call.1} parent=63 // pred_check_branch
          %506 = sbr.rel (%p504) target = $region76
        $region75: #{tpu_custom_call.1} parent=63 // pred_region
          %507 = dma.done %s500, 3072
        $region76: #{tpu_custom_call.1} parent=63 // pred_fallthru
          _
        %s508 = sand.u32 %s25, 1
        %s509 = scalar_lea.sflag [#allocation3], %s508
        %s510 = sand.u32 %s170, 1
        %s511 = smul.addr %s510, 64
        %s512 = scalar_lea.vmem [#allocation8], %s511
        // Predicated region
        $region77: #{tpu_custom_call.1} parent=63 // pred_check
          %p513 = pneg %p183
        $region78: #{tpu_custom_call.1} parent=63 // pred_check_branch
          %515 = sbr.rel (%p513) target = $region80
        $region79: #{tpu_custom_call.1} parent=63 // pred_region
          %516 = dma.done %s509, 1024
        $region80: #{tpu_custom_call.1} parent=63 // pred_fallthru
          _
        %s517 = sand.u32 %s25, 1
        %s518 = scalar_lea.sflag [#allocation3], %s517
        %s519 = sand.u32 %s222, 1
        %s520 = smul.addr %s519, 64
        %s521 = scalar_lea.vmem [#allocation9], %s520
        // Predicated region
        $region81: #{tpu_custom_call.1} parent=63 // pred_check
          %p522 = pneg %p235
        $region82: #{tpu_custom_call.1} parent=63 // pred_check_branch
          %524 = sbr.rel (%p522) target = $region84
        $region83: #{tpu_custom_call.1} parent=63 // pred_region
          %525 = dma.done %s518, 1024
        $region84: #{tpu_custom_call.1} parent=63 // pred_fallthru
          _
        %p526 = pneg %p58
        %p527 = pneg %p55
        %p528 = pneg %p79
        %p529 = pneg %p76
        %s530 = sand.u32 %s25, 1
        %s531 = scalar_lea.sflag [#allocation3], %s530
        %s532 = sand.u32 %s92, 1
        %s533 = smul.addr %s532, 192
        %s534 = scalar_lea.vmem [#allocation7], %s533
        %p535 = pneg %p105
        %p536 = pneg %p102
        %p537 = scmp.lt.s32.totalorder %s30, 1
        %s538 = scalar_select %p537, %s30, 1
        %s539 = scalar_lea.vmem %s3, %s538
        %p540 = pneg %p131
        %p541 = pneg %p128
        %p542 = scmp.lt.s32.totalorder %s30, 1
        %s543 = scalar_select %p542, %s30, 1
        %s544 = scalar_lea.vmem %s4, %s543
        %p545 = pneg %p157
        %p546 = pneg %p154
        %s547 = sand.u32 %s25, 1
        %s548 = scalar_lea.sflag [#allocation3], %s547
        %s549 = sand.u32 %s170, 1
        %s550 = smul.addr %s549, 64
        %s551 = scalar_lea.vmem [#allocation8], %s550
        %p552 = pneg %p183
        %p553 = pneg %p180
        %p554 = scmp.lt.s32.totalorder %s30, 1
        %s555 = scalar_select %p554, %s30, 1
        %s556 = scalar_lea.vmem %s6, %s555
        %p557 = pneg %p209
        %p558 = pneg %p206
        %s559 = sand.u32 %s25, 1
        %s560 = scalar_lea.sflag [#allocation3], %s559
        %s561 = sand.u32 %s222, 1
        %s562 = smul.addr %s561, 64
        %s563 = scalar_lea.vmem [#allocation9], %s562
        %p564 = pneg %p235
        %p565 = pneg %p232
        %p566 = scmp.lt.s32.totalorder %s30, 1
        %s567 = scalar_select %p566, %s30, 1
        %s568 = scalar_lea.vmem %s8, %s567
        %p569 = pneg %p261
        %p570 = pneg %p258
        %p571 = scmp.lt.s32.totalorder %s30, 1
        %s572 = scalar_select %p571, %s30, 1
        %s573 = scalar_lea.vmem %s9, %s572
        %p574 = pneg %p287
        %p575 = pneg %p284
        %p576 = scmp.lt.s32.totalorder %s30, 1
        %s577 = scalar_select %p576, %s30, 1
        %s578 = scalar_lea.vmem %s10, %s577
        %p579 = pneg %p313
        %p580 = pneg %p310
        %p581 = pneg %p339
        %p582 = pneg %p336
        %s583 = smul.u32 2, %s29
        %p584 = scmp.lt.s32.totalorder %s30, 1
        %s585 = scalar_select %p584, %s30, 1
        %s586 = scalar_lea.vmem %s3, %s585
        %p587 = scmp.lt.s32.totalorder %s30, 1
        %s588 = scalar_select %p587, %s30, 1
        %s589 = scalar_lea.vmem %s4, %s588
        %p590 = scmp.lt.s32.totalorder %s30, 1
        %s591 = scalar_select %p590, %s30, 1
        %s592 = scalar_lea.vmem %s6, %s591
        %p593 = scmp.lt.s32.totalorder %s30, 1
        %s594 = scalar_select %p593, %s30, 1
        %s595 = scalar_lea.vmem %s8, %s594
        %p596 = scmp.lt.s32.totalorder %s30, 1
        %s597 = scalar_select %p596, %s30, 1
        %s598 = scalar_lea.vmem %s9, %s597
        %p599 = scmp.lt.s32.totalorder %s30, 1
        %s600 = scalar_select %p599, %s30, 1
        %s601 = scalar_lea.vmem %s10, %s600
        %s602 = smul.u32 2, %s29
        %p604 = scmp.eq.s32.totalorder %s30, 0
        // Predicated region
        $region85: #{tpu_custom_call.1} parent=63 // pred_check
          %p605 = pneg %p604
        $region86: #{tpu_custom_call.1} parent=63 // pred_check_branch
          %607 = sbr.rel (%p605) target = $region88
        $region87: #{tpu_custom_call.1} parent=63 // pred_region
          %v608 = vld [vmem:[#allocation2] sm:$0xff]
          %v609 = vld [vmem:[#allocation2 + $0x8] sm:$0xff]
          %v610 = vld [vmem:[#allocation5] sm:$0xff]
          %v611 = vadd.f32 %v608, %v610
          %v612 = vadd.f32 %v609, %v610
          %613 = vst [vmem:[#allocation10] sm:$0xff] %v611
          %614 = vst [vmem:[#allocation10 + $0x8] sm:$0xff] %v612
        $region88: #{tpu_custom_call.1} parent=63 // pred_fallthru
          _
        %v615 = vld [vmem:[#allocation10] sm:$0xff]
        %v616 = vld [vmem:[#allocation10 + $0x8] sm:$0xff]
        %v617 = vpack.c.bf16 %v616, %v615
        %v618 = vld [vmem:[%s503] sm:$0xff]
        %v619 = vld [vmem:[%s503 + $0x8] sm:$0xf]
        %v620 = vld [vmem:[%s503 + $0xc] sm:$0xff]
        %v621 = vld [vmem:[%s503 + $0x14] sm:$0xf]
        %v622 = vld [vmem:[%s503 + $0x18] sm:$0xff]
        %v623 = vld [vmem:[%s503 + $0x20] sm:$0xf]
        %v624 = vld [vmem:[%s503 + $0x24] sm:$0xff]
        %v625 = vld [vmem:[%s503 + $0x2c] sm:$0xf]
        %v626 = vld [vmem:[%s503 + $0x30] sm:$0xff]
        %v627 = vld [vmem:[%s503 + $0x38] sm:$0xf]
        %v628 = vld [vmem:[%s503 + $0x3c] sm:$0xff]
        %v629 = vld [vmem:[%s503 + $0x44] sm:$0xf]
        %v630 = vld [vmem:[%s503 + $0x48] sm:$0xff]
        %v631 = vld [vmem:[%s503 + $0x50] sm:$0xf]
        %v632 = vld [vmem:[%s503 + $0x54] sm:$0xff]
        %v633 = vld [vmem:[%s503 + $0x5c] sm:$0xf]
        %v634 = vld [vmem:[%s503 + $0x60] sm:$0xff]
        %v635 = vld [vmem:[%s503 + $0x68] sm:$0xf]
        %v636 = vld [vmem:[%s503 + $0x6c] sm:$0xff]
        %v637 = vld [vmem:[%s503 + $0x74] sm:$0xf]
        %v638 = vld [vmem:[%s503 + $0x78] sm:$0xff]
        %v639 = vld [vmem:[%s503 + $0x80] sm:$0xf]
        %v640 = vld [vmem:[%s503 + $0x84] sm:$0xff]
        %v641 = vld [vmem:[%s503 + $0x8c] sm:$0xf]
        %v642 = vld [vmem:[%s503 + $0x90] sm:$0xff]
        %v643 = vld [vmem:[%s503 + $0x98] sm:$0xf]
        %v644 = vld [vmem:[%s503 + $0x9c] sm:$0xff]
        %v645 = vld [vmem:[%s503 + $0xa4] sm:$0xf]
        %v646 = vld [vmem:[%s503 + $0xa8] sm:$0xff]
        %v647 = vld [vmem:[%s503 + $0xb0] sm:$0xf]
        %v648 = vld [vmem:[%s503 + $0xb4] sm:$0xff]
        %v649 = vld [vmem:[%s503 + $0xbc] sm:$0xf]
        %v682 = vunpack.c.l.b16 %v618
        %v683 = vunpack.c.h.b16 %v618
        %v684 = vunpack.c.l.b16 %v619
        %v685 = vunpack.c.l.b16 %v620
        %v686 = vunpack.c.h.b16 %v620
        %v687 = vunpack.c.l.b16 %v621
        %v688 = vunpack.c.l.b16 %v622
        %v689 = vunpack.c.h.b16 %v622
        %v690 = vunpack.c.l.b16 %v623
        %v691 = vunpack.c.l.b16 %v624
        %v692 = vunpack.c.h.b16 %v624
        %v693 = vunpack.c.l.b16 %v625
        %v694 = vunpack.c.l.b16 %v626
        %v695 = vunpack.c.h.b16 %v626
        %v696 = vunpack.c.l.b16 %v627
        %v697 = vunpack.c.l.b16 %v628
        %v698 = vunpack.c.h.b16 %v628
        %v699 = vunpack.c.l.b16 %v629
        %v700 = vunpack.c.l.b16 %v630
        %v701 = vunpack.c.h.b16 %v630
        %v702 = vunpack.c.l.b16 %v631
        %v703 = vunpack.c.l.b16 %v632
        %v704 = vunpack.c.h.b16 %v632
        %v705 = vunpack.c.l.b16 %v633
        %v706 = vunpack.c.l.b16 %v634
        %v707 = vunpack.c.h.b16 %v634
        %v708 = vunpack.c.l.b16 %v635
        %v709 = vunpack.c.l.b16 %v636
        %v710 = vunpack.c.h.b16 %v636
        %v711 = vunpack.c.l.b16 %v637
        %v712 = vunpack.c.l.b16 %v638
        %v713 = vunpack.c.h.b16 %v638
        %v714 = vunpack.c.l.b16 %v639
        %v715 = vunpack.c.l.b16 %v640
        %v716 = vunpack.c.h.b16 %v640
        %v717 = vunpack.c.l.b16 %v641
        %v718 = vunpack.c.l.b16 %v642
        %v719 = vunpack.c.h.b16 %v642
        %v720 = vunpack.c.l.b16 %v643
        %v721 = vunpack.c.l.b16 %v644
        %v722 = vunpack.c.h.b16 %v644
        %v723 = vunpack.c.l.b16 %v645
        %v724 = vunpack.c.l.b16 %v646
        %v725 = vunpack.c.h.b16 %v646
        %v726 = vunpack.c.l.b16 %v647
        %v727 = vunpack.c.l.b16 %v648
        %v728 = vunpack.c.h.b16 %v648
        %v729 = vunpack.c.l.b16 %v649
        %v730 = vpack.c.b16 %v685, %v682
        %v731 = vpack.c.b16 %v686, %v683
        %v732 = vpack.c.b16 %v687, %v684
        %v733 = vpack.c.b16 %v691, %v688
        %v734 = vpack.c.b16 %v692, %v689
        %v735 = vpack.c.b16 %v693, %v690
        %v736 = vpack.c.b16 %v697, %v694
        %v737 = vpack.c.b16 %v698, %v695
        %v738 = vpack.c.b16 %v699, %v696
        %v739 = vpack.c.b16 %v703, %v700
        %v740 = vpack.c.b16 %v704, %v701
        %v741 = vpack.c.b16 %v705, %v702
        %v742 = vpack.c.b16 %v709, %v706
        %v743 = vpack.c.b16 %v710, %v707
        %v744 = vpack.c.b16 %v711, %v708
        %v745 = vpack.c.b16 %v715, %v712
        %v746 = vpack.c.b16 %v716, %v713
        %v747 = vpack.c.b16 %v717, %v714
        %v748 = vpack.c.b16 %v721, %v718
        %v749 = vpack.c.b16 %v722, %v719
        %v750 = vpack.c.b16 %v723, %v720
        %v751 = vpack.c.b16 %v727, %v724
        %v752 = vpack.c.b16 %v728, %v725
        %v753 = vpack.c.b16 %v729, %v726
        %778 = vmatprep.subr.bf16.mxu0 %v731
        %779 = vmatpush1.bf16.msra.mxu0 %v730
        %780 = vmatprep.subr.bf16.mxu0 %v734
        %781 = vmatpush1.bf16.msra.mxu0 %v733
        %782 = vmatprep.subr.bf16.mxu0 %v737
        %783 = vmatpush1.bf16.msra.mxu0 %v736
        %784 = vmatprep.subr.bf16.mxu0 %v740
        %785 = vmatpush1.bf16.msra.mxu0 %v739
        %786 = vmatprep.subr.bf16.mxu0 %v743
        %787 = vmatpush1.bf16.msra.mxu0 %v742
        %788 = vmatprep.subr.bf16.mxu0 %v746
        %789 = vmatpush1.bf16.msra.mxu0 %v745
        %790 = vmatprep.subr.bf16.mxu0 %v749
        %791 = vmatpush1.bf16.msra.mxu0 %v748
        %792 = vmatprep.subr.bf16.mxu0 %v752
        %793 = vmatpush1.bf16.msra.mxu0 %v751
        %794 = vmatprep.subr.bf16.mxu0 0
        %795 = vmatpush1.bf16.msra.mxu0 0
        %796 = vmatprep.subr.bf16.mxu0 0
        %797 = vmatpush1.bf16.msra.mxu0 0
        %798 = vmatprep.subr.bf16.mxu0 0
        %799 = vmatpush1.bf16.msra.mxu0 0
        %800 = vmatprep.subr.bf16.mxu0 0
        %801 = vmatpush1.bf16.msra.mxu0 0
        %802 = vmatprep.subr.bf16.mxu0 0
        %803 = vmatpush1.bf16.msra.mxu0 0
        %804 = vmatprep.subr.bf16.mxu0 0
        %805 = vmatpush1.bf16.msra.mxu0 0
        %806 = vmatprep.subr.bf16.mxu0 0
        %807 = vmatpush1.bf16.msra.mxu0 0
        %808 = vmatprep.subr.bf16.mxu0 0
        %809 = vmatpush1.bf16.msra.mxu0 0
        %810 = vmatprep.mubr.bf16.mxu0 0
        %811 = vmatmul.mubr.bf16.gmra.mrb[0].mxu0 %v617
        %v812 = vpop.f32.mrb[0].mxu0
        %v813 = vadd.f32 0.0, %v812
        %v814 = vpop.f32.mrb[0].mxu0
        %v815 = vadd.f32 0.0, %v814
        %v816 = vpop.f32.mrb[0].mxu0
        %v817 = vadd.f32 0.0, %v816
        %v818 = vpop.f32.mrb[0].mxu0
        %v819 = vadd.f32 0.0, %v818
        %820 = vdwg.mxu0
        %821 = vmatprep.subr.bf16.mxu0 0
        %822 = vmatpush1.bf16.msra.mxu0 %v732
        %823 = vmatprep.subr.bf16.mxu0 0
        %824 = vmatpush1.bf16.msra.mxu0 %v735
        %825 = vmatprep.subr.bf16.mxu0 0
        %826 = vmatpush1.bf16.msra.mxu0 %v738
        %827 = vmatprep.subr.bf16.mxu0 0
        %828 = vmatpush1.bf16.msra.mxu0 %v741
        %829 = vmatprep.subr.bf16.mxu0 0
        %830 = vmatpush1.bf16.msra.mxu0 %v744
        %831 = vmatprep.subr.bf16.mxu0 0
        %832 = vmatpush1.bf16.msra.mxu0 %v747
        %833 = vmatprep.subr.bf16.mxu0 0
        %834 = vmatpush1.bf16.msra.mxu0 %v750
        %835 = vmatprep.subr.bf16.mxu0 0
        %836 = vmatpush1.bf16.msra.mxu0 %v753
        %837 = vmatprep.subr.bf16.mxu0 0
        %838 = vmatpush1.bf16.msra.mxu0 0
        %839 = vmatprep.subr.bf16.mxu0 0
        %840 = vmatpush1.bf16.msra.mxu0 0
        %841 = vmatprep.subr.bf16.mxu0 0
        %842 = vmatpush1.bf16.msra.mxu0 0
        %843 = vmatprep.subr.bf16.mxu0 0
        %844 = vmatpush1.bf16.msra.mxu0 0
        %845 = vmatprep.subr.bf16.mxu0 0
        %846 = vmatpush1.bf16.msra.mxu0 0
        %847 = vmatprep.subr.bf16.mxu0 0
        %848 = vmatpush1.bf16.msra.mxu0 0
        %849 = vmatprep.subr.bf16.mxu0 0
        %850 = vmatpush1.bf16.msra.mxu0 0
        %851 = vmatprep.subr.bf16.mxu0 0
        %852 = vmatpush1.bf16.msra.mxu0 0
        %853 = vmatprep.mubr.bf16.mxu0 0
        %854 = vmatmul.mubr.bf16.gmra.mrb[0].mxu0 %v617
        %v855 = vpop.f32.mrb[0].mxu0
        %v856 = vadd.f32 0.0, %v855
        %v857 = vpop.f32.mrb[0].mxu0
        %v858 = vpop.f32.mrb[0].mxu0
        %v859 = vadd.f32 0.0, %v858
        %v860 = vpop.f32.mrb[0].mxu0
        %861 = vdwg.mxu0
        %v862 = vpack.c.bf16 %v813, %v813
        %v863 = vpack.c.bf16 %v817, %v817
        %v864 = vpack.c.bf16 %v815, %v815
        %v865 = vpack.c.bf16 %v819, %v819
        %866 = vmatprep.subr.bf16.mxu0 0
        %867 = vmatpush1.bf16.xpose.msra.mxu0 %v864
        %868 = vmatprep.subr.bf16.mxu0 0
        %869 = vmatpush1.bf16.xpose.msra.mxu0 0
        %870 = vmatprep.subr.bf16.mxu0 0
        %871 = vmatpush1.bf16.xpose.msra.mxu0 0
        %872 = vmatprep.subr.bf16.mxu0 0
        %873 = vmatpush1.bf16.xpose.msra.mxu0 0
        %874 = vmatprep.subr.bf16.mxu0 0
        %875 = vmatpush1.bf16.xpose.msra.mxu0 0
        %876 = vmatprep.subr.bf16.mxu0 0
        %877 = vmatpush1.bf16.xpose.msra.mxu0 0
        %878 = vmatprep.subr.bf16.mxu0 0
        %879 = vmatpush1.bf16.xpose.msra.mxu0 0
        %880 = vmatprep.subr.bf16.mxu0 0
        %881 = vmatpush1.bf16.xpose.msra.mxu0 0
        %882 = vmatprep.subr.bf16.mxu0 0
        %883 = vmatpush1.bf16.xpose.msra.mxu0 0
        %884 = vmatprep.subr.bf16.mxu0 0
        %885 = vmatpush1.bf16.xpose.msra.mxu0 0
        %886 = vmatprep.subr.bf16.mxu0 0
        %887 = vmatpush1.bf16.xpose.msra.mxu0 0
        %888 = vmatprep.subr.bf16.mxu0 0
        %889 = vmatpush1.bf16.xpose.msra.mxu0 0
        %890 = vmatprep.subr.bf16.mxu0 0
        %891 = vmatpush1.bf16.xpose.msra.mxu0 0
        %892 = vmatprep.subr.bf16.mxu0 0
        %893 = vmatpush1.bf16.xpose.msra.mxu0 0
        %894 = vmatprep.subr.bf16.mxu0 0
        %895 = vmatpush1.bf16.xpose.msra.mxu0 0
        %896 = vmatprep.subr.bf16.mxu0 0
        %897 = vmatpush1.bf16.xpose.msra.mxu0 0
        %898 = vmatprep.mubr.bf16.mxu0 0
        %899 = vmatmul.mubr.bf16.gmra.mrb[0].mxu0 %v862
        %v900 = vpop.f32.mrb[0].mxu0
        %v901 = vadd.f32 0.0, %v900
        %v902 = vpop.f32.mrb[0].mxu0
        %v903 = vpop.f32.mrb[0].mxu0
        %v904 = vpop.f32.mrb[0].mxu0
        %905 = vdwg.mxu0
        %906 = vmatprep.subr.bf16.mxu0 0
        %907 = vmatpush1.bf16.xpose.msra.mxu0 %v865
        %908 = vmatprep.subr.bf16.mxu0 0
        %909 = vmatpush1.bf16.xpose.msra.mxu0 0
        %910 = vmatprep.subr.bf16.mxu0 0
        %911 = vmatpush1.bf16.xpose.msra.mxu0 0
        %912 = vmatprep.subr.bf16.mxu0 0
        %913 = vmatpush1.bf16.xpose.msra.mxu0 0
        %914 = vmatprep.subr.bf16.mxu0 0
        %915 = vmatpush1.bf16.xpose.msra.mxu0 0
        %916 = vmatprep.subr.bf16.mxu0 0
        %917 = vmatpush1.bf16.xpose.msra.mxu0 0
        %918 = vmatprep.subr.bf16.mxu0 0
        %919 = vmatpush1.bf16.xpose.msra.mxu0 0
        %920 = vmatprep.subr.bf16.mxu0 0
        %921 = vmatpush1.bf16.xpose.msra.mxu0 0
        %922 = vmatprep.subr.bf16.mxu0 0
        %923 = vmatpush1.bf16.xpose.msra.mxu0 0
        %924 = vmatprep.subr.bf16.mxu0 0
        %925 = vmatpush1.bf16.xpose.msra.mxu0 0
        %926 = vmatprep.subr.bf16.mxu0 0
        %927 = vmatpush1.bf16.xpose.msra.mxu0 0
        %928 = vmatprep.subr.bf16.mxu0 0
        %929 = vmatpush1.bf16.xpose.msra.mxu0 0
        %930 = vmatprep.subr.bf16.mxu0 0
        %931 = vmatpush1.bf16.xpose.msra.mxu0 0
        %932 = vmatprep.subr.bf16.mxu0 0
        %933 = vmatpush1.bf16.xpose.msra.mxu0 0
        %934 = vmatprep.subr.bf16.mxu0 0
        %935 = vmatpush1.bf16.xpose.msra.mxu0 0
        %936 = vmatprep.subr.bf16.mxu0 0
        %937 = vmatpush1.bf16.xpose.msra.mxu0 0
        %938 = vmatprep.mubr.bf16.mxu0 0
        %939 = vmatmul.mubr.bf16.gmra.mrb[0].mxu0 %v863
        %v940 = vpop.f32.mrb[0].mxu0
        %v941 = vadd.f32 0.0, %v940
        %v942 = vpop.f32.mrb[0].mxu0
        %v943 = vpop.f32.mrb[0].mxu0
        %v944 = vpop.f32.mrb[0].mxu0
        %945 = vdwg.mxu0
        %v946 = vlaneseq
        %v947 = vshrl.u32 %v946, 7
        %v948 = vlaneseq
        %v949 = vand.u32 %v948, 127
        %vm950 = vcmp.ge.s32.totalorder %v947, %v949
        %v951 = vsel %vm950, 1, 0
        %vm952 = vcmp.eq.s32.totalorder %v951, 1
        %v953 = vsel %vm952, %v901, -1e+30
        %v954 = vsel %vm952, %v941, -1e+30
        %vm955 = vcmask 64512
        %v956 = vsel %vm955, %v953, -inf
        %957 = vmax.xlane.f32.xlu0 %v956
        %v958 = vpop.xlane.xlu0 %957
        %v959 = vsel %vm955, %v954, -inf
        %960 = vmax.xlane.f32.xlu0 %v959
        %v961 = vpop.xlane.xlu0 %960
        %v962 = vsub.f32 %v953, %v958
        %v963 = vsub.f32 %v954, %v961
        %v964 = vmul.f32 %v962, 1.442695
        %v965 = vpow.pop %v964
        %v966 = vmul.f32 %v963, 1.442695
        %v967 = vpow.pop %v966
        %v968 = vsel %vm955, %v965, 0.0
        %969 = vadd.xlane.f32.xlu0 %v968
        %v970 = vpop.xlane.xlu0 %969
        %v971 = vsel %vm955, %v967, 0.0
        %972 = vadd.xlane.f32.xlu0 %v971
        %v973 = vpop.xlane.xlu0 %972
        %v974 = vrcp.pop %v970
        %v975 = vrcp.pop %v973
        %v976 = vmul.f32 %v965, %v974
        %v977 = vmul.f32 %v967, %v975
        %v978 = vpack.c.bf16 %v976, %v976
        %v979 = vpack.c.bf16 %v977, %v977
        %v980 = vpack.c.bf16 %v856, %v856
        %v981 = vpack.c.bf16 %v859, %v859
        %v983 = vsel %vm955, %v978, 0
        %vm985 = vcmask 1043456
        %v987 = vsel %vm985, %v980, 0
        %989 = vmatprep.subr.bf16.mxu0 0
        %990 = vmatpush1.bf16.msra.mxu0 %v987
        %991 = vmatprep.subr.bf16.mxu0 0
        %992 = vmatpush1.bf16.msra.mxu0 0
        %993 = vmatprep.subr.bf16.mxu0 0
        %994 = vmatpush1.bf16.msra.mxu0 0
        %995 = vmatprep.subr.bf16.mxu0 0
        %996 = vmatpush1.bf16.msra.mxu0 0
        %997 = vmatprep.subr.bf16.mxu0 0
        %998 = vmatpush1.bf16.msra.mxu0 0
        %999 = vmatprep.subr.bf16.mxu0 0
        %1000 = vmatpush1.bf16.msra.mxu0 0
        %1001 = vmatprep.subr.bf16.mxu0 0
        %1002 = vmatpush1.bf16.msra.mxu0 0
        %1003 = vmatprep.subr.bf16.mxu0 0
        %1004 = vmatpush1.bf16.msra.mxu0 0
        %1005 = vmatprep.subr.bf16.mxu0 0
        %1006 = vmatpush1.bf16.msra.mxu0 0
        %1007 = vmatprep.subr.bf16.mxu0 0
        %1008 = vmatpush1.bf16.msra.mxu0 0
        %1009 = vmatprep.subr.bf16.mxu0 0
        %1010 = vmatpush1.bf16.msra.mxu0 0
        %1011 = vmatprep.subr.bf16.mxu0 0
        %1012 = vmatpush1.bf16.msra.mxu0 0
        %1013 = vmatprep.subr.bf16.mxu0 0
        %1014 = vmatpush1.bf16.msra.mxu0 0
        %1015 = vmatprep.subr.bf16.mxu0 0
        %1016 = vmatpush1.bf16.msra.mxu0 0
        %1017 = vmatprep.subr.bf16.mxu0 0
        %1018 = vmatpush1.bf16.msra.mxu0 0
        %1019 = vmatprep.subr.bf16.mxu0 0
        %1020 = vmatpush1.bf16.msra.mxu0 0
        %1021 = vmatprep.mubr.bf16.mxu0 0
        %1022 = vmatmul.mubr.bf16.gmra.mrb[0].mxu0 %v983
        %v1023 = vpop.f32.mrb[0].mxu0
        %v1024 = vadd.f32 0.0, %v1023
        %v1025 = vpop.f32.mrb[0].mxu0
        %v1026 = vpop.f32.mrb[0].mxu0
        %v1027 = vpop.f32.mrb[0].mxu0
        %1028 = vdwg.mxu0
        %v1030 = vsel %vm955, %v979, 0
        %v1033 = vsel %vm985, %v981, 0
        %1035 = vmatprep.subr.bf16.mxu0 0
        %1036 = vmatpush1.bf16.msra.mxu0 %v1033
        %1037 = vmatprep.subr.bf16.mxu0 0
        %1038 = vmatpush1.bf16.msra.mxu0 0
        %1039 = vmatprep.subr.bf16.mxu0 0
        %1040 = vmatpush1.bf16.msra.mxu0 0
        %1041 = vmatprep.subr.bf16.mxu0 0
        %1042 = vmatpush1.bf16.msra.mxu0 0
        %1043 = vmatprep.subr.bf16.mxu0 0
        %1044 = vmatpush1.bf16.msra.mxu0 0
        %1045 = vmatprep.subr.bf16.mxu0 0
        %1046 = vmatpush1.bf16.msra.mxu0 0
        %1047 = vmatprep.subr.bf16.mxu0 0
        %1048 = vmatpush1.bf16.msra.mxu0 0
        %1049 = vmatprep.subr.bf16.mxu0 0
        %1050 = vmatpush1.bf16.msra.mxu0 0
        %1051 = vmatprep.subr.bf16.mxu0 0
        %1052 = vmatpush1.bf16.msra.mxu0 0
        %1053 = vmatprep.subr.bf16.mxu0 0
        %1054 = vmatpush1.bf16.msra.mxu0 0
        %1055 = vmatprep.subr.bf16.mxu0 0
        %1056 = vmatpush1.bf16.msra.mxu0 0
        %1057 = vmatprep.subr.bf16.mxu0 0
        %1058 = vmatpush1.bf16.msra.mxu0 0
        %1059 = vmatprep.subr.bf16.mxu0 0
        %1060 = vmatpush1.bf16.msra.mxu0 0
        %1061 = vmatprep.subr.bf16.mxu0 0
        %1062 = vmatpush1.bf16.msra.mxu0 0
        %1063 = vmatprep.subr.bf16.mxu0 0
        %1064 = vmatpush1.bf16.msra.mxu0 0
        %1065 = vmatprep.subr.bf16.mxu0 0
        %1066 = vmatpush1.bf16.msra.mxu0 0
        %1067 = vmatprep.mubr.bf16.mxu0 0
        %1068 = vmatmul.mubr.bf16.gmra.mrb[0].mxu0 %v1030
        %v1069 = vpop.f32.mrb[0].mxu0
        %v1070 = vadd.f32 0.0, %v1069
        %v1071 = vpop.f32.mrb[0].mxu0
        %v1072 = vpop.f32.mrb[0].mxu0
        %v1073 = vpop.f32.mrb[0].mxu0
        %1074 = vdwg.mxu0
        %v1075 = vadd.f32 %v615, %v1024
        %v1076 = vadd.f32 %v616, %v1070
        %1077 = vadd.xlane.f32.xlu0 %v1075
        %v1078 = vpop.xlane.xlu0 %1077
        %1079 = vadd.xlane.f32.xlu0 %v1076
        %v1080 = vpop.xlane.xlu0 %1079
        %v1081 = vmul.f32 %v1078, 0.03125
        %v1082 = vmul.f32 %v1080, 0.03125
        %v1083 = vmul.f32 %v1075, %v1075
        %v1084 = vmul.f32 %v1076, %v1076
        %1085 = vadd.xlane.f32.xlu0 %v1083
        %v1086 = vpop.xlane.xlu0 %1085
        %1087 = vadd.xlane.f32.xlu0 %v1084
        %v1088 = vpop.xlane.xlu0 %1087
        %v1089 = vmul.f32 %v1086, 0.03125
        %v1090 = vmul.f32 %v1088, 0.03125
        %v1091 = vmul.f32 %v1081, %v1081
        %v1092 = vmul.f32 %v1082, %v1082
        %v1093 = vsub.f32 %v1089, %v1091
        %v1094 = vsub.f32 %v1090, %v1092
        %v1095 = vsub.f32 %v1075, %v1081
        %v1096 = vsub.f32 %v1076, %v1082
        %v1097 = vadd.f32 %v1093, 1e-05
        %v1098 = vadd.f32 %v1094, 1e-05
        %v1099 = vrsqrt.pop %v1097
        %v1100 = vrsqrt.pop %v1098
        %v1101 = vmul.f32 %v1095, %v1099
        %v1102 = vmul.f32 %v1096, %v1100
        %v1103 = vld [vmem:[%s586] sm:$0x1]
        %v1105 = vlaneseq
        %v1106 = vshrl.u32 %v1105, 7
        %v1107 = vsub.s32 0, %v1106
        %v1108 = vrot.slane %v1103, %v1107
        %v1110 = vmul.f32 %v1101, %v1108
        %v1111 = vmul.f32 %v1102, %v1108
        %v1112 = vld [vmem:[%s589] sm:$0x1]
        %v1114 = vlaneseq
        %v1115 = vshrl.u32 %v1114, 7
        %v1116 = vsub.s32 0, %v1115
        %v1117 = vrot.slane %v1112, %v1116
        %v1119 = vadd.f32 %v1110, %v1117
        %v1120 = vadd.f32 %v1111, %v1117
        %v1121 = vpack.c.bf16 %v1120, %v1119
        %v1122 = vld [vmem:[%s512] sm:$0xf]
        %v1123 = vld [vmem:[%s512 + $0x4] sm:$0xf]
        %v1124 = vld [vmem:[%s512 + $0x8] sm:$0xf]
        %v1125 = vld [vmem:[%s512 + $0xc] sm:$0xf]
        %v1126 = vld [vmem:[%s512 + $0x10] sm:$0xf]
        %v1127 = vld [vmem:[%s512 + $0x14] sm:$0xf]
        %v1128 = vld [vmem:[%s512 + $0x18] sm:$0xf]
        %v1129 = vld [vmem:[%s512 + $0x1c] sm:$0xf]
        %v1130 = vld [vmem:[%s512 + $0x20] sm:$0xf]
        %v1131 = vld [vmem:[%s512 + $0x24] sm:$0xf]
        %v1132 = vld [vmem:[%s512 + $0x28] sm:$0xf]
        %v1133 = vld [vmem:[%s512 + $0x2c] sm:$0xf]
        %v1134 = vld [vmem:[%s512 + $0x30] sm:$0xf]
        %v1135 = vld [vmem:[%s512 + $0x34] sm:$0xf]
        %v1136 = vld [vmem:[%s512 + $0x38] sm:$0xf]
        %v1137 = vld [vmem:[%s512 + $0x3c] sm:$0xf]
        %v1138 = vld [vmem:[%s592] sm:$0x1]
        %v1140 = vlaneseq
        %v1141 = vshrl.u32 %v1140, 7
        %v1142 = vsub.s32 0, %v1141
        %v1143 = vrot.slane %v1138, %v1142
        %v1161 = vunpack.c.l.b16 %v1122
        %v1162 = vunpack.c.l.b16 %v1123
        %v1163 = vunpack.c.l.b16 %v1124
        %v1164 = vunpack.c.l.b16 %v1125
        %v1165 = vunpack.c.l.b16 %v1126
        %v1166 = vunpack.c.l.b16 %v1127
        %v1167 = vunpack.c.l.b16 %v1128
        %v1168 = vunpack.c.l.b16 %v1129
        %v1169 = vunpack.c.l.b16 %v1130
        %v1170 = vunpack.c.l.b16 %v1131
        %v1171 = vunpack.c.l.b16 %v1132
        %v1172 = vunpack.c.l.b16 %v1133
        %v1173 = vunpack.c.l.b16 %v1134
        %v1174 = vunpack.c.l.b16 %v1135
        %v1175 = vunpack.c.l.b16 %v1136
        %v1176 = vunpack.c.l.b16 %v1137
        %v1177 = vpack.c.b16 %v1162, %v1161
        %v1178 = vpack.c.b16 %v1164, %v1163
        %v1179 = vpack.c.b16 %v1166, %v1165
        %v1180 = vpack.c.b16 %v1168, %v1167
        %v1181 = vpack.c.b16 %v1170, %v1169
        %v1182 = vpack.c.b16 %v1172, %v1171
        %v1183 = vpack.c.b16 %v1174, %v1173
        %v1184 = vpack.c.b16 %v1176, %v1175
        %1193 = vmatprep.subr.bf16.mxu0 0
        %1194 = vmatpush1.bf16.msra.mxu0 %v1177
        %1195 = vmatprep.subr.bf16.mxu0 0
        %1196 = vmatpush1.bf16.msra.mxu0 %v1178
        %1197 = vmatprep.subr.bf16.mxu0 0
        %1198 = vmatpush1.bf16.msra.mxu0 %v1179
        %1199 = vmatprep.subr.bf16.mxu0 0
        %1200 = vmatpush1.bf16.msra.mxu0 %v1180
        %1201 = vmatprep.subr.bf16.mxu0 0
        %1202 = vmatpush1.bf16.msra.mxu0 %v1181
        %1203 = vmatprep.subr.bf16.mxu0 0
        %1204 = vmatpush1.bf16.msra.mxu0 %v1182
        %1205 = vmatprep.subr.bf16.mxu0 0
        %1206 = vmatpush1.bf16.msra.mxu0 %v1183
        %1207 = vmatprep.subr.bf16.mxu0 0
        %1208 = vmatpush1.bf16.msra.mxu0 %v1184
        %1209 = vmatprep.subr.bf16.mxu0 0
        %1210 = vmatpush1.bf16.msra.mxu0 0
        %1211 = vmatprep.subr.bf16.mxu0 0
        %1212 = vmatpush1.bf16.msra.mxu0 0
        %1213 = vmatprep.subr.bf16.mxu0 0
        %1214 = vmatpush1.bf16.msra.mxu0 0
        %1215 = vmatprep.subr.bf16.mxu0 0
        %1216 = vmatpush1.bf16.msra.mxu0 0
        %1217 = vmatprep.subr.bf16.mxu0 0
        %1218 = vmatpush1.bf16.msra.mxu0 0
        %1219 = vmatprep.subr.bf16.mxu0 0
        %1220 = vmatpush1.bf16.msra.mxu0 0
        %1221 = vmatprep.subr.bf16.mxu0 0
        %1222 = vmatpush1.bf16.msra.mxu0 0
        %1223 = vmatprep.subr.bf16.mxu0 0
        %1224 = vmatpush1.bf16.msra.mxu0 0
        %1225 = vmatprep.mubr.bf16.mxu0 0
        %1226 = vmatmul.mubr.bf16.gmra.mrb[0].mxu0 %v1121
        %v1227 = vpop.f32.mrb[0].mxu0
        %v1228 = vadd.f32 %v1143, %v1227
        %v1229 = vpop.f32.mrb[0].mxu0
        %v1230 = vpop.f32.mrb[0].mxu0
        %v1231 = vadd.f32 %v1143, %v1230
        %v1232 = vpop.f32.mrb[0].mxu0
        %1233 = vdwg.mxu0
        %v1234 = vmax.f32 %v1228, 0.0
        %v1235 = vmax.f32 %v1231, 0.0
        %v1236 = vpack.c.bf16 %v1235, %v1234
        %v1237 = vld [vmem:[%s521] sm:$0xf]
        %v1238 = vld [vmem:[%s521 + $0x4] sm:$0xf]
        %v1239 = vld [vmem:[%s521 + $0x8] sm:$0xf]
        %v1240 = vld [vmem:[%s521 + $0xc] sm:$0xf]
        %v1241 = vld [vmem:[%s521 + $0x10] sm:$0xf]
        %v1242 = vld [vmem:[%s521 + $0x14] sm:$0xf]
        %v1243 = vld [vmem:[%s521 + $0x18] sm:$0xf]
        %v1244 = vld [vmem:[%s521 + $0x1c] sm:$0xf]
        %v1245 = vld [vmem:[%s521 + $0x20] sm:$0xf]
        %v1246 = vld [vmem:[%s521 + $0x24] sm:$0xf]
        %v1247 = vld [vmem:[%s521 + $0x28] sm:$0xf]
        %v1248 = vld [vmem:[%s521 + $0x2c] sm:$0xf]
        %v1249 = vld [vmem:[%s521 + $0x30] sm:$0xf]
        %v1250 = vld [vmem:[%s521 + $0x34] sm:$0xf]
        %v1251 = vld [vmem:[%s521 + $0x38] sm:$0xf]
        %v1252 = vld [vmem:[%s521 + $0x3c] sm:$0xf]
        %v1253 = vld [vmem:[%s595] sm:$0x1]
        %v1255 = vlaneseq
        %v1256 = vshrl.u32 %v1255, 7
        %v1257 = vsub.s32 0, %v1256
        %v1258 = vrot.slane %v1253, %v1257
        %v1276 = vunpack.c.l.b16 %v1237
        %v1277 = vunpack.c.l.b16 %v1238
        %v1278 = vunpack.c.l.b16 %v1239
        %v1279 = vunpack.c.l.b16 %v1240
        %v1280 = vunpack.c.l.b16 %v1241
        %v1281 = vunpack.c.l.b16 %v1242
        %v1282 = vunpack.c.l.b16 %v1243
        %v1283 = vunpack.c.l.b16 %v1244
        %v1284 = vunpack.c.l.b16 %v1245
        %v1285 = vunpack.c.l.b16 %v1246
        %v1286 = vunpack.c.l.b16 %v1247
        %v1287 = vunpack.c.l.b16 %v1248
        %v1288 = vunpack.c.l.b16 %v1249
        %v1289 = vunpack.c.l.b16 %v1250
        %v1290 = vunpack.c.l.b16 %v1251
        %v1291 = vunpack.c.l.b16 %v1252
        %v1292 = vpack.c.b16 %v1277, %v1276
        %v1293 = vpack.c.b16 %v1279, %v1278
        %v1294 = vpack.c.b16 %v1281, %v1280
        %v1295 = vpack.c.b16 %v1283, %v1282
        %v1296 = vpack.c.b16 %v1285, %v1284
        %v1297 = vpack.c.b16 %v1287, %v1286
        %v1298 = vpack.c.b16 %v1289, %v1288
        %v1299 = vpack.c.b16 %v1291, %v1290
        %1308 = vmatprep.subr.bf16.mxu0 0
        %1309 = vmatpush1.bf16.msra.mxu0 %v1292
        %1310 = vmatprep.subr.bf16.mxu0 0
        %1311 = vmatpush1.bf16.msra.mxu0 %v1293
        %1312 = vmatprep.subr.bf16.mxu0 0
        %1313 = vmatpush1.bf16.msra.mxu0 %v1294
        %1314 = vmatprep.subr.bf16.mxu0 0
        %1315 = vmatpush1.bf16.msra.mxu0 %v1295
        %1316 = vmatprep.subr.bf16.mxu0 0
        %1317 = vmatpush1.bf16.msra.mxu0 %v1296
        %1318 = vmatprep.subr.bf16.mxu0 0
        %1319 = vmatpush1.bf16.msra.mxu0 %v1297
        %1320 = vmatprep.subr.bf16.mxu0 0
        %1321 = vmatpush1.bf16.msra.mxu0 %v1298
        %1322 = vmatprep.subr.bf16.mxu0 0
        %1323 = vmatpush1.bf16.msra.mxu0 %v1299
        %1324 = vmatprep.subr.bf16.mxu0 0
        %1325 = vmatpush1.bf16.msra.mxu0 0
        %1326 = vmatprep.subr.bf16.mxu0 0
        %1327 = vmatpush1.bf16.msra.mxu0 0
        %1328 = vmatprep.subr.bf16.mxu0 0
        %1329 = vmatpush1.bf16.msra.mxu0 0
        %1330 = vmatprep.subr.bf16.mxu0 0
        %1331 = vmatpush1.bf16.msra.mxu0 0
        %1332 = vmatprep.subr.bf16.mxu0 0
        %1333 = vmatpush1.bf16.msra.mxu0 0
        %1334 = vmatprep.subr.bf16.mxu0 0
        %1335 = vmatpush1.bf16.msra.mxu0 0
        %1336 = vmatprep.subr.bf16.mxu0 0
        %1337 = vmatpush1.bf16.msra.mxu0 0
        %1338 = vmatprep.subr.bf16.mxu0 0
        %1339 = vmatpush1.bf16.msra.mxu0 0
        %1340 = vmatprep.mubr.bf16.mxu0 0
        %1341 = vmatmul.mubr.bf16.gmra.mrb[0].mxu0 %v1236
        %v1342 = vpop.f32.mrb[0].mxu0
        %v1343 = vadd.f32 %v1258, %v1342
        %v1344 = vpop.f32.mrb[0].mxu0
        %v1345 = vpop.f32.mrb[0].mxu0
        %v1346 = vadd.f32 %v1258, %v1345
        %v1347 = vpop.f32.mrb[0].mxu0
        %1348 = vdwg.mxu0
        %v1349 = vadd.f32 %v1119, %v1343
        %v1350 = vadd.f32 %v1120, %v1346
        %1351 = vadd.xlane.f32.xlu0 %v1349
        %v1352 = vpop.xlane.xlu0 %1351
        %1353 = vadd.xlane.f32.xlu0 %v1350
        %v1354 = vpop.xlane.xlu0 %1353
        %v1355 = vmul.f32 %v1352, 0.03125
        %v1356 = vmul.f32 %v1354, 0.03125
        %v1357 = vmul.f32 %v1349, %v1349
        %v1358 = vmul.f32 %v1350, %v1350
        %1359 = vadd.xlane.f32.xlu0 %v1357
        %v1360 = vpop.xlane.xlu0 %1359
        %1361 = vadd.xlane.f32.xlu0 %v1358
        %v1362 = vpop.xlane.xlu0 %1361
        %v1363 = vmul.f32 %v1360, 0.03125
        %v1364 = vmul.f32 %v1362, 0.03125
        %v1365 = vmul.f32 %v1355, %v1355
        %v1366 = vmul.f32 %v1356, %v1356
        %v1367 = vsub.f32 %v1363, %v1365
        %v1368 = vsub.f32 %v1364, %v1366
        %v1369 = vsub.f32 %v1349, %v1355
        %v1370 = vsub.f32 %v1350, %v1356
        %v1371 = vadd.f32 %v1367, 1e-05
        %v1372 = vadd.f32 %v1368, 1e-05
        %v1373 = vrsqrt.pop %v1371
        %v1374 = vrsqrt.pop %v1372
        %v1375 = vmul.f32 %v1369, %v1373
        %v1376 = vmul.f32 %v1370, %v1374
        %v1377 = vld [vmem:[%s598] sm:$0x1]
        %v1379 = vlaneseq
        %v1380 = vshrl.u32 %v1379, 7
        %v1381 = vsub.s32 0, %v1380
        %v1382 = vrot.slane %v1377, %v1381
        %v1384 = vmul.f32 %v1375, %v1382
        %v1385 = vmul.f32 %v1376, %v1382
        %v1386 = vld [vmem:[%s601] sm:$0x1]
        %v1388 = vlaneseq
        %v1389 = vshrl.u32 %v1388, 7
        %v1390 = vsub.s32 0, %v1389
        %v1391 = vrot.slane %v1386, %v1390
        %v1393 = vadd.f32 %v1384, %v1391
        %v1394 = vadd.f32 %v1385, %v1391
        %1395 = vst [vmem:[#allocation10] sm:$0xff] %v1393
        %1396 = vst [vmem:[#allocation10 + $0x8] sm:$0xff] %v1394
        // Predicated region
        $region89: #{tpu_custom_call.1} parent=63 // pred_check
          %p1397 = pneg %p336
        $region90: #{tpu_custom_call.1} parent=63 // pred_check_branch
          %1399 = sbr.rel (%p1397) target = $region92
        $region91: #{tpu_custom_call.1} parent=63 // pred_region
          %s1400 = smul.u32 2, %s29
          %s1402 = ssub.s32 256, 256
          %1403 = vsyncadd [#allocation4], %s1402
          %s1404 = smul.addr %s1400, 128
          %s1405 = scalar_lea.hbm %s11, %s1404
          %s1406 = sshll.u32 [#allocation10], 4
          %s1407 = int_to_ptr.vmem [resolvable:$true] %s1406
          %1412 = dma.vmem_to_hbm [thread:$0]  %s1407, 256, %s1405, [#allocation4], 128, 128, 8
        $region92: #{tpu_custom_call.1} parent=63 // pred_fallthru
          _
        // Predicated region
        $region93: #{tpu_custom_call.1} parent=63 // pred_check
          %p1413 = pneg %p336
        $region94: #{tpu_custom_call.1} parent=63 // pred_check_branch
          %1415 = sbr.rel (%p1413) target = $region96
        $region95: #{tpu_custom_call.1} parent=63 // pred_region
          %1416 = dma.done [#allocation4], 256
        $region96: #{tpu_custom_call.1} parent=63 // pred_fallthru
          _
      $region64: #{tpu_custom_call.1} parent=5 // pred_fallthru
        _
      %p1417 = scmp.le.s32.totalorder 2, %s20
      // Predicated region
      $region97: #{tpu_custom_call.1} parent=5 // pred_check
        %p1418 = pneg %p1417
      $region98: #{tpu_custom_call.1} parent=5 // pred_check_branch
        %1420 = sbr.rel (%p1418) target = $region100
      $region99: #{tpu_custom_call.1} parent=5 // pred_region
        %s1421 = ssub.s32 %s20, 2
      $region100: #{tpu_custom_call.1} parent=5 // pred_fallthru
        _
    $region6: #{tpu_custom_call.1} parent=1 // loop_footer
      %s24 = sadd.s32 1, %s20
    $region7: #{tpu_custom_call.1} parent=1 // loop_footer_branch
      %19 = sbr.rel target = $region3
    $region8: #{tpu_custom_call.1} parent=1 // loop_exit
      _
    %1422 = vsyncpa [#allocation3], 1
    %s1423 = scalar_lea.sflag [#allocation3], 1
    %1424 = vsyncpa %s1423, 1
    %1425 = vsyncpa [#allocation6], 1
    %1426 = vsyncpa [#allocation4], 1
    %s1427 = scalar_lea.sflag [#allocation4], 1
    %1428 = vsyncpa %s1427, 1

</llo_original>
